<compile_context>
chip_gen: v5e
topology: v5e:2x2
jax: 0.10.0
libtpu: 0.0.40
codegen_flags: <defaults>
</compile_context>

<pallas_src>
import numpy as np
import jax
import jax.numpy as jnp
from jax import lax
from jax.experimental import pallas as pl
from jax.experimental.pallas import tpu as pltpu


# ----------------------------- mask construction -----------------------------
def get_mask(in_features, out_features, in_flow_features, mask_type=None):
    """Same semantics as the PyTorch get_mask."""
    if mask_type == 'input':
        in_degrees = np.arange(in_features) % in_flow_features
    else:
        in_degrees = np.arange(in_features) % (in_flow_features - 1)
    if mask_type == 'output':
        out_degrees = np.arange(out_features) % in_flow_features - 1
    else:
        out_degrees = np.arange(out_features) % (in_flow_features - 1)
    return (out_degrees[:, None] >= in_degrees[None, :]).astype(np.float32)


def _round_up(n, m):
    return ((n + m - 1) // m) * m


def _pad2(a, rows, cols):
    return jnp.pad(a, ((0, rows - a.shape[0]), (0, cols - a.shape[1])))


# --------------------------------- kernel ------------------------------------
def made_kernel(x_ref, w1_ref, b1_ref, w2_ref, b2_ref,
                w3m_ref, b3m_ref, w3a_ref, b3a_ref,
                u_ref, ld_ref):
    x = x_ref[...]                       # (TM, Dp) f32 row tile
    cdt = w1_ref.dtype                   # matmul operand dtype (f32 or bf16)

    # Joiner + trunk hidden layer (ReLU in f32, accumulation in f32).
    h = jnp.dot(x.astype(cdt), w1_ref[...], preferred_element_type=jnp.float32)
    h = jnp.maximum(h + b1_ref[...], 0.0)
    h = jnp.dot(h.astype(cdt), w2_ref[...], preferred_element_type=jnp.float32)
    h = jnp.maximum(h + b2_ref[...], 0.0)
    hc = h.astype(cdt)

    # Output layer split into the a-half and m-half: two lane-aligned matmuls
    # instead of one (TM, 2D) result followed by a mid-tile lane slice.
    # Epilogue is ordered to keep at most two (TM, Dp) f32 temporaries live:
    # a -> (logdet, e = exp(-a)) retires a, then m, then u.
    a = jnp.dot(hc, w3a_ref[...], preferred_element_type=jnp.float32) + b3a_ref[...]

    # logdet = -sum(a, -1), produced lane-dense as an (8, TM) slab (8 identical
    # rows) via a last-dim/last-dim contraction (same pattern as q.k^T).  This
    # avoids a sublane->lane relayout and a masked (TM, 1) column store; the
    # wrapper keeps row 0.  Zero-padded columns of `a` contribute exactly 0.
    ones_rows = jnp.ones((8, a.shape[-1]), dtype=jnp.float32)
    ld_ref[...] = -lax.dot_general(
        ones_rows, a, (((1,), (1,)), ((), ())),
        preferred_element_type=jnp.float32)

    e = jnp.exp(-a)
    m = jnp.dot(hc, w3m_ref[...], preferred_element_type=jnp.float32) + b3m_ref[...]
    u_ref[...] = (x - m) * e


# ---------------------------- parameter handling ------------------------------
def init_made_params(num_inputs, num_hidden, key):
    """Deterministic synthetic parameters (same shapes as the PyTorch module)."""
    ks = jax.random.split(key, 6)
    D, H = num_inputs, num_hidden
    params = {
        # joiner: MaskedLinear(D -> H), input mask
        "w1": jax.random.normal(ks[0], (H, D), jnp.float32) * 0.1,
        "b1": jax.random.normal(ks[1], (H,), jnp.float32) * 0.1,
        "mask1": jnp.asarray(get_mask(D, H, D, mask_type='input')),
        # trunk[1]: MaskedLinear(H -> H), hidden mask
        "w2": jax.random.normal(ks[2], (H, H), jnp.float32) * 0.1,
        "b2": jax.random.normal(ks[3], (H,), jnp.float32) * 0.1,
        "mask2": jnp.asarray(get_mask(H, H, D)),
        # trunk[3]: MaskedLinear(H -> 2D), output mask
        "w3": jax.random.normal(ks[4], (2 * D, H), jnp.float32) * 0.1,
        "b3": jax.random.normal(ks[5], (2 * D,), jnp.float32) * 0.1,
        "mask3": jnp.asarray(get_mask(H, 2 * D, D, mask_type='output')),
    }
    return params


def prepare_made_params(params, *, matmul_dtype=jnp.float32):
    """One-time parameter glue: mask-multiply, transpose, m/a split, zero-pad
    to 128 lanes, optional bf16 cast.  Call once, reuse across forward calls
    (this is O(H^2) work that would otherwise dominate small-batch inference)."""
    H, D = params["w1"].shape
    dp = _round_up(D, 128)
    hp = _round_up(H, 128)

    w1m = (params["w1"] * params["mask1"]).T          # (D, H)
    w2m = (params["w2"] * params["mask2"]).T          # (H, H)
    w3m_full = (params["w3"] * params["mask3"]).T     # (H, 2D)
    w3_m, w3_a = w3m_full[:, :D], w3m_full[:, D:]     # (H, D) each

    return {
        "D": D, "H": H, "dp": dp, "hp": hp, "dtype": jnp.dtype(matmul_dtype),
        "w1": _pad2(w1m, dp, hp).astype(matmul_dtype),
        "w2": _pad2(w2m, hp, hp).astype(matmul_dtype),
        "w3m": _pad2(w3_m, hp, dp).astype(matmul_dtype),
        "w3a": _pad2(w3_a, hp, dp).astype(matmul_dtype),
        "b1": _pad2(params["b1"][None, :], 1, hp),
        "b2": _pad2(params["b2"][None, :], 1, hp),
        "b3m": _pad2(params["b3"][None, :D], 1, dp),
        "b3a": _pad2(params["b3"][None, D:], 1, dp),
    }


# ------------------------- generation-aware sizing ----------------------------
def _vmem_capacity_and_cores():
    """Per-TensorCore VMEM capacity and #TCs, from device kind (conservative
    default for unknown/future chips), sanity-capped by get_tpu_info if usable."""
    try:
        kind = jax.devices()[0].device_kind.lower()
    except Exception:
        kind = ""
    cores = 2 if "v7" in kind else 1
    if "v5" in kind or "v6" in kind:
        vmem = 128 << 20
    else:
        vmem = 64 << 20          # v7x and unknown chips: tight budget
    try:
        info_vmem = int(pltpu.get_tpu_info().vmem_capacity_bytes)
        vmem = min(vmem, info_vmem)
    except Exception:
        pass
    return vmem, cores


def _select_tile(M, dp, hp, w_itemsize, vmem_cap, num_cores):
    """Pick the row tile TM from {1024,512,256,128}: must fit the VMEM budget,
    prefer >=2 tiles per TensorCore (v7x megacore), then minimal row padding,
    then the largest tile.  Returns (tm, estimated_vmem_bytes)."""
    mr = _round_up(M, 128)
    weight_bytes = ((dp * hp + hp * hp + 2 * hp * dp) * w_itemsize
                    + (2 * hp + 2 * dp) * 4)           # single-buffered
    headroom = 8 << 20

    def estimate(tm):
        # x/u row tiles double-buffered (f32) + the small logdet slab,
        # plus in-kernel f32 temporaries (h, hc, a/e/m shortened live ranges).
        stream = 2 * 2 * tm * dp * 4 + 2 * 2 * 8 * tm * 4
        temps = tm * (2 * hp + 3 * dp) * 4
        return weight_bytes + stream + temps

    best = None
    for tm in (1024, 512, 256, 128):
        if tm > mr:
            continue
        need = estimate(tm)
        if need + headroom > vmem_cap:
            continue
        mp = _round_up(M, tm)
        ntiles = mp // tm
        want_tiles = 2 * num_cores if num_cores > 1 else 1
        meets_cores = 1 if ntiles >= min(want_tiles, mr // 128) else 0
        key = (-meets_cores, mp - M, -tm)
        if best is None or key < best[0]:
            best = (key, tm, need)
    if best is None:                                    # huge H: smallest tile
        return 128, estimate(128)
    return best[1], best[2]


# -------------------------------- wrapper ------------------------------------
def made_forward(x, prepared):
    """x: (B, T, D) float32 -> (u: (B, T, D), -sum(a): (B, T, 1)).
    `prepared` comes from prepare_made_params (call it once and reuse)."""
    B, T, D = x.shape
    assert D == prepared["D"], "feature dim mismatch with prepared params"
    M = B * T
    dp, hp = prepared["dp"], prepared["hp"]
    w_itemsize = prepared["dtype"].itemsize

    vmem_cap, num_cores = _vmem_capacity_and_cores()
    tm, vmem_needed = _select_tile(M, dp, hp, w_itemsize, vmem_cap, num_cores)
    mp = _round_up(M, tm)
    grid = (mp // tm,)
    vmem_limit = int(min(max(vmem_cap - (4 << 20), 32 << 20),
                         max(32 << 20, vmem_needed + (8 << 20))))

    xp = _pad2(x.reshape(M, D).astype(jnp.float32), mp, dp)
    weights = (prepared["w1"], prepared["b1"], prepared["w2"], prepared["b2"],
               prepared["w3m"], prepared["b3m"], prepared["w3a"], prepared["b3a"])

    def run(single_buffer_weights):
        # Weights/biases use a constant index_map so they stay VMEM-resident;
        # single-buffering them (Buffered(1)) halves their VMEM footprint with
        # no loss of overlap since the same block is revisited every step.
        if single_buffer_weights:
            const = lambda shape: pl.BlockSpec(shape, lambda i: (0, 0),
                                               pipeline_mode=pl.Buffered(1))
        else:
            const = lambda shape: pl.BlockSpec(shape, lambda i: (0, 0))
        call = pl.pallas_call(
            made_kernel,
            grid=grid,
            out_shape=(
                jax.ShapeDtypeStruct((mp, dp), jnp.float32),
                jax.ShapeDtypeStruct((8, mp), jnp.float32),
            ),
            in_specs=[
                pl.BlockSpec((tm, dp), lambda i: (i, 0)),   # x row tile (pipelined)
                const((dp, hp)), const((1, hp)),            # W1, b1
                const((hp, hp)), const((1, hp)),            # W2, b2
                const((hp, dp)), const((1, dp)),            # W3_m, b3_m
                const((hp, dp)), const((1, dp)),            # W3_a, b3_a
            ],
            out_specs=(
                pl.BlockSpec((tm, dp), lambda i: (i, 0)),   # u row tile
                pl.BlockSpec((8, tm), lambda i: (0, i)),    # lane-dense logdet slab
            ),
            compiler_params=pltpu.CompilerParams(
                dimension_semantics=("parallel",),          # row loop over 2 TCs on v7x
                vmem_limit_bytes=vmem_limit,
            ),
        )
        return call(xp, *weights)

    try:
        u_pad, ld_pad = run(True)
    except Exception:
        # Identical math; only the weight buffering differs (safety fallback if
        # this JAX build rejects buffer_count=1 BlockSpecs).
        u_pad, ld_pad = run(False)

    u = u_pad[:M, :D].reshape(B, T, D)
    logdet = ld_pad[0, :M].reshape(B, T, 1)
    return u, logdet


# ------------------------------ pure-JAX ref ----------------------------------
def made_forward_ref(x, params):
    w1m = params["w1"] * params["mask1"]
    w2m = params["w2"] * params["mask2"]
    w3m = params["w3"] * params["mask3"]
    h = x @ w1m.T + params["b1"]
    h = jax.nn.relu(h)
    h = jax.nn.relu(h @ w2m.T + params["b2"])
    out = h @ w3m.T + params["b3"]
    D = x.shape[-1]
    m, a = out[..., :D], out[..., D:]
    u = (x - m) * jnp.exp(-a)
    return u, -jnp.sum(a, axis=-1, keepdims=True)


if __name__ == "__main__":
    B, T = 2, 8
    num_inputs, num_hidden = 4, 32

    key = jax.random.PRNGKey(0)
    k_x, k_p = jax.random.split(key)
    x = jax.random.normal(k_x, (B, T, num_inputs), jnp.float32)
    params = init_made_params(num_inputs, num_hidden, k_p)

    u_exp, ld_exp = made_forward_ref(x, params)

    # f32 matmul path (matches the PyTorch module's numerics).
    prep_f32 = prepare_made_params(params, matmul_dtype=jnp.float32)
    u, logdet = made_forward(x, prep_f32)
    jax.block_until_ready((u, logdet))
    np.testing.assert_allclose(np.asarray(u), np.asarray(u_exp), rtol=1e-5, atol=1e-5)
    np.testing.assert_allclose(np.asarray(logdet), np.asarray(ld_exp), rtol=1e-5, atol=1e-5)

    # bf16-operand MXU path (f32 accumulation) — fast path on v5e/v6e/v7x
    # (all generations have bf16-native MXUs; bf16 also halves weight DMA/VMEM).
    prep_bf16 = prepare_made_params(params, matmul_dtype=jnp.bfloat16)
    u16, ld16 = made_forward(x, prep_bf16)
    jax.block_until_ready((u16, ld16))
    np.testing.assert_allclose(np.asarray(u16), np.asarray(u_exp), rtol=2e-2, atol=2e-2)
    np.testing.assert_allclose(np.asarray(ld16), np.asarray(ld_exp), rtol=2e-2, atol=2e-2)

    print("KERNEL_OK")
</pallas_src>

<mosaic_0001>
module attributes {stable_mosaic.version = 11 : i64} {
  func.func @made_kernel(%arg0: i32, %arg1: memref<128x128xf32, #tpu.memory_space<vmem>>, %arg2: memref<128x128xf32, #tpu.memory_space<vmem>>, %arg3: memref<1x128xf32, #tpu.memory_space<vmem>>, %arg4: memref<128x128xf32, #tpu.memory_space<vmem>>, %arg5: memref<1x128xf32, #tpu.memory_space<vmem>>, %arg6: memref<128x128xf32, #tpu.memory_space<vmem>>, %arg7: memref<1x128xf32, #tpu.memory_space<vmem>>, %arg8: memref<128x128xf32, #tpu.memory_space<vmem>>, %arg9: memref<1x128xf32, #tpu.memory_space<vmem>>, %arg10: memref<128x128xf32, #tpu.memory_space<vmem>>, %arg11: memref<8x128xf32, #tpu.memory_space<vmem>>) attributes {dimension_semantics = [#tpu.dimension_semantics<parallel>], iteration_bounds = array<i64: 1>, scalar_prefetch = 0 : i64, scratch_operands = 0 : i64, tpu.core_type = #tpu.core_type<tc>, window_params = [{transform_indices = @transform_0, window_bounds = array<i64: 128, 128>}, {pipeline_mode = #tpu.pipeline_mode<synchronous>, transform_indices = @transform_1, window_bounds = array<i64: 128, 128>}, {pipeline_mode = #tpu.pipeline_mode<synchronous>, transform_indices = @transform_2, window_bounds = array<i64: 1, 128>}, {pipeline_mode = #tpu.pipeline_mode<synchronous>, transform_indices = @transform_3, window_bounds = array<i64: 128, 128>}, {pipeline_mode = #tpu.pipeline_mode<synchronous>, transform_indices = @transform_4, window_bounds = array<i64: 1, 128>}, {pipeline_mode = #tpu.pipeline_mode<synchronous>, transform_indices = @transform_5, window_bounds = array<i64: 128, 128>}, {pipeline_mode = #tpu.pipeline_mode<synchronous>, transform_indices = @transform_6, window_bounds = array<i64: 1, 128>}, {pipeline_mode = #tpu.pipeline_mode<synchronous>, transform_indices = @transform_7, window_bounds = array<i64: 128, 128>}, {pipeline_mode = #tpu.pipeline_mode<synchronous>, transform_indices = @transform_8, window_bounds = array<i64: 1, 128>}, {transform_indices = @transform_9, window_bounds = array<i64: 128, 128>}, {transform_indices = @transform_10, window_bounds = array<i64: 8, 128>}]} {
    %c0 = arith.constant 0 : index
    %c0_0 = arith.constant 0 : index
    %0 = vector.load %arg1[%c0, %c0_0] : memref<128x128xf32, #tpu.memory_space<vmem>>, vector<128x128xf32>
    %c0_1 = arith.constant 0 : index
    %c0_2 = arith.constant 0 : index
    %1 = vector.load %arg2[%c0_1, %c0_2] : memref<128x128xf32, #tpu.memory_space<vmem>>, vector<128x128xf32>
    %cst = arith.constant dense<0.000000e+00> : vector<128x128xf32>
    %2 = tpu.matmul %0, %1, %cst {dimension_numbers = #tpu.dot_dimension_numbers<[1], [0], [0], [1], [0, 0, 1, 1], [], []>} : vector<128x128xf32>, vector<128x128xf32>, vector<128x128xf32> -> vector<128x128xf32>
    %c0_3 = arith.constant 0 : index
    %c0_4 = arith.constant 0 : index
    %3 = vector.load %arg3[%c0_3, %c0_4] : memref<1x128xf32, #tpu.memory_space<vmem>>, vector<1x128xf32>
    %4 = vector.broadcast %3 : vector<1x128xf32> to vector<128x128xf32>
    %5 = arith.addf %2, %4 : vector<128x128xf32>
    %cst_5 = arith.constant 0.000000e+00 : f32
    %6 = vector.broadcast %cst_5 : f32 to vector<128x128xf32>
    %7 = arith.maximumf %5, %6 : vector<128x128xf32>
    %c0_6 = arith.constant 0 : index
    %c0_7 = arith.constant 0 : index
    %8 = vector.load %arg4[%c0_6, %c0_7] : memref<128x128xf32, #tpu.memory_space<vmem>>, vector<128x128xf32>
    %cst_8 = arith.constant dense<0.000000e+00> : vector<128x128xf32>
    %9 = tpu.matmul %7, %8, %cst_8 {dimension_numbers = #tpu.dot_dimension_numbers<[1], [0], [0], [1], [0, 0, 1, 1], [], []>} : vector<128x128xf32>, vector<128x128xf32>, vector<128x128xf32> -> vector<128x128xf32>
    %c0_9 = arith.constant 0 : index
    %c0_10 = arith.constant 0 : index
    %10 = vector.load %arg5[%c0_9, %c0_10] : memref<1x128xf32, #tpu.memory_space<vmem>>, vector<1x128xf32>
    %11 = vector.broadcast %10 : vector<1x128xf32> to vector<128x128xf32>
    %12 = arith.addf %9, %11 : vector<128x128xf32>
    %cst_11 = arith.constant 0.000000e+00 : f32
    %13 = vector.broadcast %cst_11 : f32 to vector<128x128xf32>
    %14 = arith.maximumf %12, %13 : vector<128x128xf32>
    %c0_12 = arith.constant 0 : index
    %c0_13 = arith.constant 0 : index
    %15 = vector.load %arg8[%c0_12, %c0_13] : memref<128x128xf32, #tpu.memory_space<vmem>>, vector<128x128xf32>
    %cst_14 = arith.constant dense<0.000000e+00> : vector<128x128xf32>
    %16 = tpu.matmul %14, %15, %cst_14 {dimension_numbers = #tpu.dot_dimension_numbers<[1], [0], [0], [1], [0, 0, 1, 1], [], []>} : vector<128x128xf32>, vector<128x128xf32>, vector<128x128xf32> -> vector<128x128xf32>
    %c0_15 = arith.constant 0 : index
    %c0_16 = arith.constant 0 : index
    %17 = vector.load %arg9[%c0_15, %c0_16] : memref<1x128xf32, #tpu.memory_space<vmem>>, vector<1x128xf32>
    %18 = vector.broadcast %17 : vector<1x128xf32> to vector<128x128xf32>
    %19 = arith.addf %16, %18 : vector<128x128xf32>
    %cst_17 = arith.constant 1.000000e+00 : f32
    %20 = vector.broadcast %cst_17 : f32 to vector<8x128xf32>
    %cst_18 = arith.constant dense<0.000000e+00> : vector<8x128xf32>
    %21 = tpu.matmul %20, %19, %cst_18 {dimension_numbers = #tpu.dot_dimension_numbers<[1], [1], [0], [0], [0, 0, 1, 0], [], []>} : vector<8x128xf32>, vector<128x128xf32>, vector<8x128xf32> -> vector<8x128xf32>
    %cst_19 = arith.constant 0.000000e+00 : f32
    %22 = vector.broadcast %cst_19 : f32 to vector<8x128xf32>
    %23 = arith.subf %22, %21 : vector<8x128xf32>
    %c0_20 = arith.constant 0 : index
    %c0_21 = arith.constant 0 : index
    %24 = vector.load %arg11[%c0_20, %c0_21] : memref<8x128xf32, #tpu.memory_space<vmem>>, vector<8x128xf32>
    tpu.vector_store %arg11[%c0_20, %c0_21], %23 {strides = array<i32>} : memref<8x128xf32, #tpu.memory_space<vmem>>, vector<8x128xf32>,
    %cst_22 = arith.constant 0.000000e+00 : f32
    %25 = vector.broadcast %cst_22 : f32 to vector<128x128xf32>
    %26 = arith.subf %25, %19 : vector<128x128xf32>
    %27 = math.exp %26 : vector<128x128xf32>
    %c0_23 = arith.constant 0 : index
    %c0_24 = arith.constant 0 : index
    %28 = vector.load %arg6[%c0_23, %c0_24] : memref<128x128xf32, #tpu.memory_space<vmem>>, vector<128x128xf32>
    %cst_25 = arith.constant dense<0.000000e+00> : vector<128x128xf32>
    %29 = tpu.matmul %14, %28, %cst_25 {dimension_numbers = #tpu.dot_dimension_numbers<[1], [0], [0], [1], [0, 0, 1, 1], [], []>} : vector<128x128xf32>, vector<128x128xf32>, vector<128x128xf32> -> vector<128x128xf32>
    %c0_26 = arith.constant 0 : index
    %c0_27 = arith.constant 0 : index
    %30 = vector.load %arg7[%c0_26, %c0_27] : memref<1x128xf32, #tpu.memory_space<vmem>>, vector<1x128xf32>
    %31 = vector.broadcast %30 : vector<1x128xf32> to vector<128x128xf32>
    %32 = arith.addf %29, %31 : vector<128x128xf32>
    %33 = arith.subf %0, %32 : vector<128x128xf32>
    %34 = arith.mulf %33, %27 : vector<128x128xf32>
    %c0_28 = arith.constant 0 : index
    %c0_29 = arith.constant 0 : index
    %35 = vector.load %arg10[%c0_28, %c0_29] : memref<128x128xf32, #tpu.memory_space<vmem>>, vector<128x128xf32>
    tpu.vector_store %arg10[%c0_28, %c0_29], %34 {strides = array<i32>} : memref<128x128xf32, #tpu.memory_space<vmem>>, vector<128x128xf32>,
    return
  }
  func.func @transform_0(%arg0: i32) -> (i32, i32) {
    %c0_i32 = arith.constant 0 : i32
    %c0_i32_0 = arith.constant 0 : i32
    return %arg0, %c0_i32 : i32, i32
  }
  func.func @transform_1(%arg0: i32) -> (i32, i32) {
    %c0_i32 = arith.constant 0 : i32
    %c0_i32_0 = arith.constant 0 : i32
    %c0_i32_1 = arith.constant 0 : i32
    return %c0_i32, %c0_i32_0 : i32, i32
  }
  func.func @transform_2(%arg0: i32) -> (i32, i32) {
    %c0_i32 = arith.constant 0 : i32
    %c0_i32_0 = arith.constant 0 : i32
    %c0_i32_1 = arith.constant 0 : i32
    return %c0_i32, %c0_i32_0 : i32, i32
  }
  func.func @transform_3(%arg0: i32) -> (i32, i32) {
    %c0_i32 = arith.constant 0 : i32
    %c0_i32_0 = arith.constant 0 : i32
    %c0_i32_1 = arith.constant 0 : i32
    return %c0_i32, %c0_i32_0 : i32, i32
  }
  func.func @transform_4(%arg0: i32) -> (i32, i32) {
    %c0_i32 = arith.constant 0 : i32
    %c0_i32_0 = arith.constant 0 : i32
    %c0_i32_1 = arith.constant 0 : i32
    return %c0_i32, %c0_i32_0 : i32, i32
  }
  func.func @transform_5(%arg0: i32) -> (i32, i32) {
    %c0_i32 = arith.constant 0 : i32
    %c0_i32_0 = arith.constant 0 : i32
    %c0_i32_1 = arith.constant 0 : i32
    return %c0_i32, %c0_i32_0 : i32, i32
  }
  func.func @transform_6(%arg0: i32) -> (i32, i32) {
    %c0_i32 = arith.constant 0 : i32
    %c0_i32_0 = arith.constant 0 : i32
    %c0_i32_1 = arith.constant 0 : i32
    return %c0_i32, %c0_i32_0 : i32, i32
  }
  func.func @transform_7(%arg0: i32) -> (i32, i32) {
    %c0_i32 = arith.constant 0 : i32
    %c0_i32_0 = arith.constant 0 : i32
    %c0_i32_1 = arith.constant 0 : i32
    return %c0_i32, %c0_i32_0 : i32, i32
  }
  func.func @transform_8(%arg0: i32) -> (i32, i32) {
    %c0_i32 = arith.constant 0 : i32
    %c0_i32_0 = arith.constant 0 : i32
    %c0_i32_1 = arith.constant 0 : i32
    return %c0_i32, %c0_i32_0 : i32, i32
  }
  func.func @transform_9(%arg0: i32) -> (i32, i32) {
    %c0_i32 = arith.constant 0 : i32
    %c0_i32_0 = arith.constant 0 : i32
    return %arg0, %c0_i32 : i32, i32
  }
  func.func @transform_10(%arg0: i32) -> (i32, i32) {
    %c0_i32 = arith.constant 0 : i32
    %c0_i32_0 = arith.constant 0 : i32
    return %c0_i32, %arg0 : i32, i32
  }
}

module attributes {stable_mosaic.version = 11 : i64} {
  func.func @made_kernel(%arg0: i32, %arg1: memref<128x128xf32, #tpu.memory_space<vmem>>, %arg2: memref<128x128xf32, #tpu.memory_space<vmem>>, %arg3: memref<1x128xf32, #tpu.memory_space<vmem>>, %arg4: memref<128x128xf32, #tpu.memory_space<vmem>>, %arg5: memref<1x128xf32, #tpu.memory_space<vmem>>, %arg6: memref<128x128xf32, #tpu.memory_space<vmem>>, %arg7: memref<1x128xf32, #tpu.memory_space<vmem>>, %arg8: memref<128x128xf32, #tpu.memory_space<vmem>>, %arg9: memref<1x128xf32, #tpu.memory_space<vmem>>, %arg10: memref<128x128xf32, #tpu.memory_space<vmem>>, %arg11: memref<8x128xf32, #tpu.memory_space<vmem>>) attributes {dimension_semantics = [#tpu.dimension_semantics<parallel>], iteration_bounds = array<i64: 1>, scalar_prefetch = 0 : i64, scratch_operands = 0 : i64, tpu.core_type = #tpu.core_type<tc>, window_params = [{transform_indices = @transform_0, window_bounds = array<i64: 128, 128>}, {pipeline_mode = #tpu.pipeline_mode<synchronous>, transform_indices = @transform_1, window_bounds = array<i64: 128, 128>}, {pipeline_mode = #tpu.pipeline_mode<synchronous>, transform_indices = @transform_2, window_bounds = array<i64: 1, 128>}, {pipeline_mode = #tpu.pipeline_mode<synchronous>, transform_indices = @transform_3, window_bounds = array<i64: 128, 128>}, {pipeline_mode = #tpu.pipeline_mode<synchronous>, transform_indices = @transform_4, window_bounds = array<i64: 1, 128>}, {pipeline_mode = #tpu.pipeline_mode<synchronous>, transform_indices = @transform_5, window_bounds = array<i64: 128, 128>}, {pipeline_mode = #tpu.pipeline_mode<synchronous>, transform_indices = @transform_6, window_bounds = array<i64: 1, 128>}, {pipeline_mode = #tpu.pipeline_mode<synchronous>, transform_indices = @transform_7, window_bounds = array<i64: 128, 128>}, {pipeline_mode = #tpu.pipeline_mode<synchronous>, transform_indices = @transform_8, window_bounds = array<i64: 1, 128>}, {transform_indices = @transform_9, window_bounds = array<i64: 128, 128>}, {transform_indices = @transform_10, window_bounds = array<i64: 8, 128>}]} {
    %c0 = arith.constant 0 : index
    %c0_0 = arith.constant 0 : index
    %0 = vector.load %arg1[%c0, %c0_0] : memref<128x128xf32, #tpu.memory_space<vmem>>, vector<128x128xf32>
    %c0_1 = arith.constant 0 : index
    %c0_2 = arith.constant 0 : index
    %1 = vector.load %arg2[%c0_1, %c0_2] : memref<128x128xf32, #tpu.memory_space<vmem>>, vector<128x128xf32>
    %cst = arith.constant dense<0.000000e+00> : vector<128x128xf32>
    %2 = tpu.matmul %0, %1, %cst {dimension_numbers = #tpu.dot_dimension_numbers<[1], [0], [0], [1], [0, 0, 1, 1], [], []>} : vector<128x128xf32>, vector<128x128xf32>, vector<128x128xf32> -> vector<128x128xf32>
    %c0_3 = arith.constant 0 : index
    %c0_4 = arith.constant 0 : index
    %3 = vector.load %arg3[%c0_3, %c0_4] : memref<1x128xf32, #tpu.memory_space<vmem>>, vector<1x128xf32>
    %4 = vector.broadcast %3 : vector<1x128xf32> to vector<128x128xf32>
    %5 = arith.addf %2, %4 : vector<128x128xf32>
    %cst_5 = arith.constant 0.000000e+00 : f32
    %6 = vector.broadcast %cst_5 : f32 to vector<128x128xf32>
    %7 = arith.maximumf %5, %6 : vector<128x128xf32>
    %c0_6 = arith.constant 0 : index
    %c0_7 = arith.constant 0 : index
    %8 = vector.load %arg4[%c0_6, %c0_7] : memref<128x128xf32, #tpu.memory_space<vmem>>, vector<128x128xf32>
    %cst_8 = arith.constant dense<0.000000e+00> : vector<128x128xf32>
    %9 = tpu.matmul %7, %8, %cst_8 {dimension_numbers = #tpu.dot_dimension_numbers<[1], [0], [0], [1], [0, 0, 1, 1], [], []>} : vector<128x128xf32>, vector<128x128xf32>, vector<128x128xf32> -> vector<128x128xf32>
    %c0_9 = arith.constant 0 : index
    %c0_10 = arith.constant 0 : index
    %10 = vector.load %arg5[%c0_9, %c0_10] : memref<1x128xf32, #tpu.memory_space<vmem>>, vector<1x128xf32>
    %11 = vector.broadcast %10 : vector<1x128xf32> to vector<128x128xf32>
    %12 = arith.addf %9, %11 : vector<128x128xf32>
    %cst_11 = arith.constant 0.000000e+00 : f32
    %13 = vector.broadcast %cst_11 : f32 to vector<128x128xf32>
    %14 = arith.maximumf %12, %13 : vector<128x128xf32>
    %c0_12 = arith.constant 0 : index
    %c0_13 = arith.constant 0 : index
    %15 = vector.load %arg8[%c0_12, %c0_13] : memref<128x128xf32, #tpu.memory_space<vmem>>, vector<128x128xf32>
    %cst_14 = arith.constant dense<0.000000e+00> : vector<128x128xf32>
    %16 = tpu.matmul %14, %15, %cst_14 {dimension_numbers = #tpu.dot_dimension_numbers<[1], [0], [0], [1], [0, 0, 1, 1], [], []>} : vector<128x128xf32>, vector<128x128xf32>, vector<128x128xf32> -> vector<128x128xf32>
    %c0_15 = arith.constant 0 : index
    %c0_16 = arith.constant 0 : index
    %17 = vector.load %arg9[%c0_15, %c0_16] : memref<1x128xf32, #tpu.memory_space<vmem>>, vector<1x128xf32>
    %18 = vector.broadcast %17 : vector<1x128xf32> to vector<128x128xf32>
    %19 = arith.addf %16, %18 : vector<128x128xf32>
    %cst_17 = arith.constant 1.000000e+00 : f32
    %20 = vector.broadcast %cst_17 : f32 to vector<8x128xf32>
    %cst_18 = arith.constant dense<0.000000e+00> : vector<8x128xf32>
    %21 = tpu.matmul %20, %19, %cst_18 {dimension_numbers = #tpu.dot_dimension_numbers<[1], [1], [0], [0], [0, 0, 1, 0], [], []>} : vector<8x128xf32>, vector<128x128xf32>, vector<8x128xf32> -> vector<8x128xf32>
    %cst_19 = arith.constant 0.000000e+00 : f32
    %22 = vector.broadcast %cst_19 : f32 to vector<8x128xf32>
    %23 = arith.subf %22, %21 : vector<8x128xf32>
    %c0_20 = arith.constant 0 : index
    %c0_21 = arith.constant 0 : index
    %24 = vector.load %arg11[%c0_20, %c0_21] : memref<8x128xf32, #tpu.memory_space<vmem>>, vector<8x128xf32>
    tpu.vector_store %arg11[%c0_20, %c0_21], %23 {strides = array<i32>} : memref<8x128xf32, #tpu.memory_space<vmem>>, vector<8x128xf32>,
    %cst_22 = arith.constant 0.000000e+00 : f32
    %25 = vector.broadcast %cst_22 : f32 to vector<128x128xf32>
    %26 = arith.subf %25, %19 : vector<128x128xf32>
    %27 = math.exp %26 : vector<128x128xf32>
    %c0_23 = arith.constant 0 : index
    %c0_24 = arith.constant 0 : index
    %28 = vector.load %arg6[%c0_23, %c0_24] : memref<128x128xf32, #tpu.memory_space<vmem>>, vector<128x128xf32>
    %cst_25 = arith.constant dense<0.000000e+00> : vector<128x128xf32>
    %29 = tpu.matmul %14, %28, %cst_25 {dimension_numbers = #tpu.dot_dimension_numbers<[1], [0], [0], [1], [0, 0, 1, 1], [], []>} : vector<128x128xf32>, vector<128x128xf32>, vector<128x128xf32> -> vector<128x128xf32>
    %c0_26 = arith.constant 0 : index
    %c0_27 = arith.constant 0 : index
    %30 = vector.load %arg7[%c0_26, %c0_27] : memref<1x128xf32, #tpu.memory_space<vmem>>, vector<1x128xf32>
    %31 = vector.broadcast %30 : vector<1x128xf32> to vector<128x128xf32>
    %32 = arith.addf %29, %31 : vector<128x128xf32>
    %33 = arith.subf %0, %32 : vector<128x128xf32>
    %34 = arith.mulf %33, %27 : vector<128x128xf32>
    %c0_28 = arith.constant 0 : index
    %c0_29 = arith.constant 0 : index
    %35 = vector.load %arg10[%c0_28, %c0_29] : memref<128x128xf32, #tpu.memory_space<vmem>>, vector<128x128xf32>
    tpu.vector_store %arg10[%c0_28, %c0_29], %34 {strides = array<i32>} : memref<128x128xf32, #tpu.memory_space<vmem>>, vector<128x128xf32>,
    return
  }
  func.func @transform_0(%arg0: i32) -> (i32, i32) {
    %c0_i32 = arith.constant 0 : i32
    %c0_i32_0 = arith.constant 0 : i32
    return %arg0, %c0_i32 : i32, i32
  }
  func.func @transform_1(%arg0: i32) -> (i32, i32) {
    %c0_i32 = arith.constant 0 : i32
    %c0_i32_0 = arith.constant 0 : i32
    %c0_i32_1 = arith.constant 0 : i32
    return %c0_i32, %c0_i32_0 : i32, i32
  }
  func.func @transform_2(%arg0: i32) -> (i32, i32) {
    %c0_i32 = arith.constant 0 : i32
    %c0_i32_0 = arith.constant 0 : i32
    %c0_i32_1 = arith.constant 0 : i32
    return %c0_i32, %c0_i32_0 : i32, i32
  }
  func.func @transform_3(%arg0: i32) -> (i32, i32) {
    %c0_i32 = arith.constant 0 : i32
    %c0_i32_0 = arith.constant 0 : i32
    %c0_i32_1 = arith.constant 0 : i32
    return %c0_i32, %c0_i32_0 : i32, i32
  }
  func.func @transform_4(%arg0: i32) -> (i32, i32) {
    %c0_i32 = arith.constant 0 : i32
    %c0_i32_0 = arith.constant 0 : i32
    %c0_i32_1 = arith.constant 0 : i32
    return %c0_i32, %c0_i32_0 : i32, i32
  }
  func.func @transform_5(%arg0: i32) -> (i32, i32) {
    %c0_i32 = arith.constant 0 : i32
    %c0_i32_0 = arith.constant 0 : i32
    %c0_i32_1 = arith.constant 0 : i32
    return %c0_i32, %c0_i32_0 : i32, i32
  }
  func.func @transform_6(%arg0: i32) -> (i32, i32) {
    %c0_i32 = arith.constant 0 : i32
    %c0_i32_0 = arith.constant 0 : i32
    %c0_i32_1 = arith.constant 0 : i32
    return %c0_i32, %c0_i32_0 : i32, i32
  }
  func.func @transform_7(%arg0: i32) -> (i32, i32) {
    %c0_i32 = arith.constant 0 : i32
    %c0_i32_0 = arith.constant 0 : i32
    %c0_i32_1 = arith.constant 0 : i32
    return %c0_i32, %c0_i32_0 : i32, i32
  }
  func.func @transform_8(%arg0: i32) -> (i32, i32) {
    %c0_i32 = arith.constant 0 : i32
    %c0_i32_0 = arith.constant 0 : i32
    %c0_i32_1 = arith.constant 0 : i32
    return %c0_i32, %c0_i32_0 : i32, i32
  }
  func.func @transform_9(%arg0: i32) -> (i32, i32) {
    %c0_i32 = arith.constant 0 : i32
    %c0_i32_0 = arith.constant 0 : i32
    return %arg0, %c0_i32 : i32, i32
  }
  func.func @transform_10(%arg0: i32) -> (i32, i32) {
    %c0_i32 = arith.constant 0 : i32
    %c0_i32_0 = arith.constant 0 : i32
    return %c0_i32, %arg0 : i32, i32
  }
}

</mosaic_0001>

<llo_original>
// kernel: tpu_custom_call.1
$region0: #{tpu_custom_call.1}
  #allocation0 [shape = 'u32[]', space=smem, size = 0x4, offset = 0x4, fixed_abs, tag = 'smem constant byte address 0x4 - core index']
  #allocation1 [shape = 'u32[72,128]{1,0:T(1,128)}', space=vmem, size = 0x9000, scoped, tag = 'internal scratch']
  %s0 = inlined_call_operand.hbm [shape: f32[128,128], index: 0, kind: input, shape index: {}]
  %s1 = inlined_call_operand.hbm [shape: f32[128,128], index: 1, kind: input, shape index: {}]
  %s2 = inlined_call_operand.vmem [shape: f32[1,128], index: 2, kind: input, shape index: {}]
  %s3 = inlined_call_operand.hbm [shape: f32[128,128], index: 3, kind: input, shape index: {}]
  %s4 = inlined_call_operand.vmem [shape: f32[1,128], index: 4, kind: input, shape index: {}]
  %s5 = inlined_call_operand.hbm [shape: f32[128,128], index: 5, kind: input, shape index: {}]
  %s6 = inlined_call_operand.vmem [shape: f32[1,128], index: 6, kind: input, shape index: {}]
  %s7 = inlined_call_operand.hbm [shape: f32[128,128], index: 7, kind: input, shape index: {}]
  %s8 = inlined_call_operand.vmem [shape: f32[1,128], index: 8, kind: input, shape index: {}]
  %s9 = inlined_call_operand.hbm [shape: f32[128,128], index: 9, kind: output, shape index: {0}]
  %s10 = inlined_call_operand.hbm [shape: f32[8,128], index: 10, kind: output, shape index: {1}]
  %11 = xla_tuple %s9, %s10
  %s12 = sld [smem:[#allocation0]]
  $region74: #{tpu_custom_call.1} parent=0
    _
  %s14 = ssub.s32 1, %s12
  %s15 = scalar_select 0, %s14, %s12
  $region1: #{tpu_custom_call.1} parent=0
    #allocation2 [shape = 'u8[65536]{0}', space=vmem, size = 0x10000, scoped, tag = 'input window, operand 0, single buffered']
    #allocation3 [shape = 's32[1]{0}', space=sflag, size = 0x4, scoped, tag = 'scoped memory for tpu_custom_call.1']
    #allocation4 [shape = 's32[1]{0}', space=sflag, size = 0x4, scoped, tag = 'scoped memory for tpu_custom_call.1']
    #allocation5 [shape = 'u8[65536]{0}', space=vmem, size = 0x10000, scoped, tag = 'input window, operand 1, single buffered']
    #allocation6 [shape = 's32[1]{0}', space=sflag, size = 0x4, scoped, tag = 'scoped memory for tpu_custom_call.1']
    #allocation7 [shape = 'u8[65536]{0}', space=vmem, size = 0x10000, scoped, tag = 'input window, operand 3, single buffered']
    #allocation8 [shape = 'u8[65536]{0}', space=vmem, size = 0x10000, scoped, tag = 'input window, operand 5, single buffered']
    #allocation9 [shape = 's32[1]{0}', space=sflag, size = 0x4, scoped, tag = 'scoped memory for tpu_custom_call.1']
    #allocation10 [shape = 'u8[65536]{0}', space=vmem, size = 0x10000, scoped, tag = 'input window, operand 7, single buffered']
    #allocation11 [shape = 'u8[65536]{0}', space=vmem, size = 0x10000, scoped, tag = 'output window, operand 0, single buffered']
    #allocation12 [shape = 'u8[4096]{0}', space=vmem, size = 0x1000, scoped, tag = 'output window, operand 1, single buffered']
    #allocation13 [shape = 's32[1]{0}', space=sflag, size = 0x4, scoped, tag = 'scoped memory for tpu_custom_call.1']
    %16 = vsyncpa [#allocation3], 0
    %17 = vsyncpa [#allocation6], 0
    %18 = vsyncpa [#allocation9], 0
    %19 = vsyncpa [#allocation4], 0
    %20 = vsyncpa [#allocation13], 0
    // Predicated region
    $region2: #{tpu_custom_call.1} parent=1 // pred_check
      _
    $region3: #{tpu_custom_call.1} parent=1 // pred_check_branch
      %22 = sbr.rel (0) target = $region5
    $region4: #{tpu_custom_call.1} parent=1 // pred_region
      %24 = vsyncadd [#allocation3], 0
      %s25 = sshll.u32 %s0, 4
      %s26 = int_to_ptr.hbm [resolvable:$true] %s25
      %s27 = sshll.u32 [#allocation2], 4
      %s28 = int_to_ptr.vmem [resolvable:$true] %s27
      %33 = dma.hbm_to_vmem [thread:$0]  %s26, 2048, %s28, [#allocation3], 128, 128, 8
    $region5: #{tpu_custom_call.1} parent=1 // pred_fallthru
      _
    // Predicated region
    $region6: #{tpu_custom_call.1} parent=1 // pred_check
      _
    $region7: #{tpu_custom_call.1} parent=1 // pred_check_branch
      %35 = sbr.rel (0) target = $region9
    $region8: #{tpu_custom_call.1} parent=1 // pred_region
      %37 = vsyncadd [#allocation6], 0
      %s38 = sshll.u32 %s1, 4
      %s39 = int_to_ptr.hbm [resolvable:$true] %s38
      %s40 = sshll.u32 [#allocation5], 4
      %s41 = int_to_ptr.vmem [resolvable:$true] %s40
      %46 = dma.hbm_to_vmem [thread:$0]  %s39, 2048, %s41, [#allocation6], 128, 128, 8
    $region9: #{tpu_custom_call.1} parent=1 // pred_fallthru
      _
    // Predicated region
    $region10: #{tpu_custom_call.1} parent=1 // pred_check
      _
    $region11: #{tpu_custom_call.1} parent=1 // pred_check_branch
      %48 = sbr.rel (0) target = $region13
    $region12: #{tpu_custom_call.1} parent=1 // pred_region
      _
    $region13: #{tpu_custom_call.1} parent=1 // pred_fallthru
      _
    // Predicated region
    $region14: #{tpu_custom_call.1} parent=1 // pred_check
      _
    $region15: #{tpu_custom_call.1} parent=1 // pred_check_branch
      %50 = sbr.rel (0) target = $region17
    $region16: #{tpu_custom_call.1} parent=1 // pred_region
      %52 = vsyncadd [#allocation6], 0
      %s53 = sshll.u32 %s3, 4
      %s54 = int_to_ptr.hbm [resolvable:$true] %s53
      %s55 = sshll.u32 [#allocation7], 4
      %s56 = int_to_ptr.vmem [resolvable:$true] %s55
      %61 = dma.hbm_to_vmem [thread:$0]  %s54, 2048, %s56, [#allocation6], 128, 128, 8
    $region17: #{tpu_custom_call.1} parent=1 // pred_fallthru
      _
    // Predicated region
    $region18: #{tpu_custom_call.1} parent=1 // pred_check
      _
    $region19: #{tpu_custom_call.1} parent=1 // pred_check_branch
      %63 = sbr.rel (0) target = $region21
    $region20: #{tpu_custom_call.1} parent=1 // pred_region
      _
    $region21: #{tpu_custom_call.1} parent=1 // pred_fallthru
      _
    // Predicated region
    $region22: #{tpu_custom_call.1} parent=1 // pred_check
      _
    $region23: #{tpu_custom_call.1} parent=1 // pred_check_branch
      %65 = sbr.rel (0) target = $region25
    $region24: #{tpu_custom_call.1} parent=1 // pred_region
      %67 = vsyncadd [#allocation9], 0
      %s68 = sshll.u32 %s5, 4
      %s69 = int_to_ptr.hbm [resolvable:$true] %s68
      %s70 = sshll.u32 [#allocation8], 4
      %s71 = int_to_ptr.vmem [resolvable:$true] %s70
      %76 = dma.hbm_to_vmem [thread:$0]  %s69, 2048, %s71, [#allocation9], 128, 128, 8
    $region25: #{tpu_custom_call.1} parent=1 // pred_fallthru
      _
    // Predicated region
    $region26: #{tpu_custom_call.1} parent=1 // pred_check
      _
    $region27: #{tpu_custom_call.1} parent=1 // pred_check_branch
      %78 = sbr.rel (0) target = $region29
    $region28: #{tpu_custom_call.1} parent=1 // pred_region
      _
    $region29: #{tpu_custom_call.1} parent=1 // pred_fallthru
      _
    // Predicated region
    $region30: #{tpu_custom_call.1} parent=1 // pred_check
      _
    $region31: #{tpu_custom_call.1} parent=1 // pred_check_branch
      %80 = sbr.rel (0) target = $region33
    $region32: #{tpu_custom_call.1} parent=1 // pred_region
      %82 = vsyncadd [#allocation9], 0
      %s83 = sshll.u32 %s7, 4
      %s84 = int_to_ptr.hbm [resolvable:$true] %s83
      %s85 = sshll.u32 [#allocation10], 4
      %s86 = int_to_ptr.vmem [resolvable:$true] %s85
      %91 = dma.hbm_to_vmem [thread:$0]  %s84, 2048, %s86, [#allocation9], 128, 128, 8
    $region33: #{tpu_custom_call.1} parent=1 // pred_fallthru
      _
    // Predicated region
    $region34: #{tpu_custom_call.1} parent=1 // pred_check
      _
    $region35: #{tpu_custom_call.1} parent=1 // pred_check_branch
      %93 = sbr.rel (0) target = $region37
    $region36: #{tpu_custom_call.1} parent=1 // pred_region
      _
    $region37: #{tpu_custom_call.1} parent=1 // pred_fallthru
      _
    // Predicated region
    $region38: #{tpu_custom_call.1} parent=1 // pred_check
      _
    $region39: #{tpu_custom_call.1} parent=1 // pred_check_branch
      %95 = sbr.rel (0) target = $region41
    $region40: #{tpu_custom_call.1} parent=1 // pred_region
      %97 = dma.done [#allocation3], 2048
    $region41: #{tpu_custom_call.1} parent=1 // pred_fallthru
      _
    // Predicated region
    $region42: #{tpu_custom_call.1} parent=1 // pred_check
      _
    $region43: #{tpu_custom_call.1} parent=1 // pred_check_branch
      %99 = sbr.rel (0) target = $region45
    $region44: #{tpu_custom_call.1} parent=1 // pred_region
      %101 = dma.done [#allocation6], 2048
    $region45: #{tpu_custom_call.1} parent=1 // pred_fallthru
      _
    // Predicated region
    $region46: #{tpu_custom_call.1} parent=1 // pred_check
      _
    $region47: #{tpu_custom_call.1} parent=1 // pred_check_branch
      %103 = sbr.rel (0) target = $region49
    $region48: #{tpu_custom_call.1} parent=1 // pred_region
      %105 = dma.done [#allocation6], 2048
    $region49: #{tpu_custom_call.1} parent=1 // pred_fallthru
      _
    // Predicated region
    $region50: #{tpu_custom_call.1} parent=1 // pred_check
      _
    $region51: #{tpu_custom_call.1} parent=1 // pred_check_branch
      %107 = sbr.rel (0) target = $region53
    $region52: #{tpu_custom_call.1} parent=1 // pred_region
      %109 = dma.done [#allocation9], 2048
    $region53: #{tpu_custom_call.1} parent=1 // pred_fallthru
      _
    // Predicated region
    $region54: #{tpu_custom_call.1} parent=1 // pred_check
      _
    $region55: #{tpu_custom_call.1} parent=1 // pred_check_branch
      %111 = sbr.rel (0) target = $region57
    $region56: #{tpu_custom_call.1} parent=1 // pred_region
      %113 = dma.done [#allocation9], 2048
    $region57: #{tpu_custom_call.1} parent=1 // pred_fallthru
      _
    %v114 = vld [vmem:[#allocation2] sm:$0xff]
    %v115 = vld [vmem:[#allocation2 + $0x8] sm:$0xff]
    %v116 = vld [vmem:[#allocation2 + $0x10] sm:$0xff]
    %v117 = vld [vmem:[#allocation2 + $0x18] sm:$0xff]
    %v118 = vld [vmem:[#allocation2 + $0x20] sm:$0xff]
    %v119 = vld [vmem:[#allocation2 + $0x28] sm:$0xff]
    %v120 = vld [vmem:[#allocation2 + $0x30] sm:$0xff]
    %v121 = vld [vmem:[#allocation2 + $0x38] sm:$0xff]
    %v122 = vld [vmem:[#allocation2 + $0x40] sm:$0xff]
    %v123 = vld [vmem:[#allocation2 + $0x48] sm:$0xff]
    %v124 = vld [vmem:[#allocation2 + $0x50] sm:$0xff]
    %v125 = vld [vmem:[#allocation2 + $0x58] sm:$0xff]
    %v126 = vld [vmem:[#allocation2 + $0x60] sm:$0xff]
    %v127 = vld [vmem:[#allocation2 + $0x68] sm:$0xff]
    %v128 = vld [vmem:[#allocation2 + $0x70] sm:$0xff]
    %v129 = vld [vmem:[#allocation2 + $0x78] sm:$0xff]
    %v130 = vld [vmem:[#allocation5] sm:$0xff]
    %v131 = vld [vmem:[#allocation5 + $0x8] sm:$0xff]
    %v132 = vld [vmem:[#allocation5 + $0x10] sm:$0xff]
    %v133 = vld [vmem:[#allocation5 + $0x18] sm:$0xff]
    %v134 = vld [vmem:[#allocation5 + $0x20] sm:$0xff]
    %v135 = vld [vmem:[#allocation5 + $0x28] sm:$0xff]
    %v136 = vld [vmem:[#allocation5 + $0x30] sm:$0xff]
    %v137 = vld [vmem:[#allocation5 + $0x38] sm:$0xff]
    %v138 = vld [vmem:[#allocation5 + $0x40] sm:$0xff]
    %v139 = vld [vmem:[#allocation5 + $0x48] sm:$0xff]
    %v140 = vld [vmem:[#allocation5 + $0x50] sm:$0xff]
    %v141 = vld [vmem:[#allocation5 + $0x58] sm:$0xff]
    %v142 = vld [vmem:[#allocation5 + $0x60] sm:$0xff]
    %v143 = vld [vmem:[#allocation5 + $0x68] sm:$0xff]
    %v144 = vld [vmem:[#allocation5 + $0x70] sm:$0xff]
    %v145 = vld [vmem:[#allocation5 + $0x78] sm:$0xff]
    %v146 = vld [vmem:[%s2] sm:$0x1]
    %v148 = vperm.slane %v146, 0
    %150 = vmatpush.msra.mxu0 %v145
    %151 = vmatpush.msra.mxu0 %v144
    %152 = vmatpush.msra.mxu0 %v143
    %153 = vmatpush.msra.mxu0 %v142
    %154 = vmatpush.msra.mxu0 %v141
    %155 = vmatpush.msra.mxu0 %v140
    %156 = vmatpush.msra.mxu0 %v139
    %157 = vmatpush.msra.mxu0 %v138
    %158 = vmatpush.msra.mxu0 %v137
    %159 = vmatpush.msra.mxu0 %v136
    %160 = vmatpush.msra.mxu0 %v135
    %161 = vmatpush.msra.mxu0 %v134
    %162 = vmatpush.msra.mxu0 %v133
    %163 = vmatpush.msra.mxu0 %v132
    %164 = vmatpush.msra.mxu0 %v131
    %165 = vmatpush.msra.mxu0 %v130
    %166 = vmatmul.f32.gmra.mxu0 %v114
    %v167 = vpop.f32.mrf.mxu0
    %v168 = vadd.f32 %v148, %v167
    %169 = vmatmul.f32.gmra.mxu0 %v115
    %v170 = vpop.f32.mrf.mxu0
    %v171 = vadd.f32 %v148, %v170
    %172 = vmatmul.f32.gmra.mxu0 %v116
    %v173 = vpop.f32.mrf.mxu0
    %v174 = vadd.f32 %v148, %v173
    %175 = vmatmul.f32.gmra.mxu0 %v117
    %v176 = vpop.f32.mrf.mxu0
    %v177 = vadd.f32 %v148, %v176
    %178 = vmatmul.f32.gmra.mxu0 %v118
    %v179 = vpop.f32.mrf.mxu0
    %v180 = vadd.f32 %v148, %v179
    %181 = vmatmul.f32.gmra.mxu0 %v119
    %v182 = vpop.f32.mrf.mxu0
    %v183 = vadd.f32 %v148, %v182
    %184 = vmatmul.f32.gmra.mxu0 %v120
    %v185 = vpop.f32.mrf.mxu0
    %v186 = vadd.f32 %v148, %v185
    %187 = vmatmul.f32.gmra.mxu0 %v121
    %v188 = vpop.f32.mrf.mxu0
    %v189 = vadd.f32 %v148, %v188
    %190 = vmatmul.f32.gmra.mxu0 %v122
    %v191 = vpop.f32.mrf.mxu0
    %v192 = vadd.f32 %v148, %v191
    %193 = vmatmul.f32.gmra.mxu0 %v123
    %v194 = vpop.f32.mrf.mxu0
    %v195 = vadd.f32 %v148, %v194
    %196 = vmatmul.f32.gmra.mxu0 %v124
    %v197 = vpop.f32.mrf.mxu0
    %v198 = vadd.f32 %v148, %v197
    %199 = vmatmul.f32.gmra.mxu0 %v125
    %v200 = vpop.f32.mrf.mxu0
    %v201 = vadd.f32 %v148, %v200
    %202 = vmatmul.f32.gmra.mxu0 %v126
    %v203 = vpop.f32.mrf.mxu0
    %v204 = vadd.f32 %v148, %v203
    %205 = vmatmul.f32.gmra.mxu0 %v127
    %v206 = vpop.f32.mrf.mxu0
    %v207 = vadd.f32 %v148, %v206
    %208 = vmatmul.f32.gmra.mxu0 %v128
    %v209 = vpop.f32.mrf.mxu0
    %v210 = vadd.f32 %v148, %v209
    %211 = vmatmul.f32.gmra.mxu0 %v129
    %v212 = vpop.f32.mrf.mxu0
    %v213 = vadd.f32 %v148, %v212
    %214 = vdwg.mxu0
    %v215 = vmax.f32 %v168, 0.0
    %v216 = vmax.f32 %v171, 0.0
    %v217 = vmax.f32 %v174, 0.0
    %v218 = vmax.f32 %v177, 0.0
    %v219 = vmax.f32 %v180, 0.0
    %v220 = vmax.f32 %v183, 0.0
    %v221 = vmax.f32 %v186, 0.0
    %v222 = vmax.f32 %v189, 0.0
    %v223 = vmax.f32 %v192, 0.0
    %v224 = vmax.f32 %v195, 0.0
    %v225 = vmax.f32 %v198, 0.0
    %v226 = vmax.f32 %v201, 0.0
    %v227 = vmax.f32 %v204, 0.0
    %v228 = vmax.f32 %v207, 0.0
    %v229 = vmax.f32 %v210, 0.0
    %v230 = vmax.f32 %v213, 0.0
    %v231 = vld [vmem:[#allocation7] sm:$0xff]
    %v232 = vld [vmem:[#allocation7 + $0x8] sm:$0xff]
    %v233 = vld [vmem:[#allocation7 + $0x10] sm:$0xff]
    %v234 = vld [vmem:[#allocation7 + $0x18] sm:$0xff]
    %v235 = vld [vmem:[#allocation7 + $0x20] sm:$0xff]
    %v236 = vld [vmem:[#allocation7 + $0x28] sm:$0xff]
    %v237 = vld [vmem:[#allocation7 + $0x30] sm:$0xff]
    %v238 = vld [vmem:[#allocation7 + $0x38] sm:$0xff]
    %v239 = vld [vmem:[#allocation7 + $0x40] sm:$0xff]
    %v240 = vld [vmem:[#allocation7 + $0x48] sm:$0xff]
    %v241 = vld [vmem:[#allocation7 + $0x50] sm:$0xff]
    %v242 = vld [vmem:[#allocation7 + $0x58] sm:$0xff]
    %v243 = vld [vmem:[#allocation7 + $0x60] sm:$0xff]
    %v244 = vld [vmem:[#allocation7 + $0x68] sm:$0xff]
    %v245 = vld [vmem:[#allocation7 + $0x70] sm:$0xff]
    %v246 = vld [vmem:[#allocation7 + $0x78] sm:$0xff]
    %v247 = vld [vmem:[%s4] sm:$0x1]
    %v249 = vperm.slane %v247, 0
    %251 = vmatpush.msra.mxu0 %v246
    %252 = vmatpush.msra.mxu0 %v245
    %253 = vmatpush.msra.mxu0 %v244
    %254 = vmatpush.msra.mxu0 %v243
    %255 = vmatpush.msra.mxu0 %v242
    %256 = vmatpush.msra.mxu0 %v241
    %257 = vmatpush.msra.mxu0 %v240
    %258 = vmatpush.msra.mxu0 %v239
    %259 = vmatpush.msra.mxu0 %v238
    %260 = vmatpush.msra.mxu0 %v237
    %261 = vmatpush.msra.mxu0 %v236
    %262 = vmatpush.msra.mxu0 %v235
    %263 = vmatpush.msra.mxu0 %v234
    %264 = vmatpush.msra.mxu0 %v233
    %265 = vmatpush.msra.mxu0 %v232
    %266 = vmatpush.msra.mxu0 %v231
    %267 = vmatmul.f32.gmra.mxu0 %v215
    %v268 = vpop.f32.mrf.mxu0
    %v269 = vadd.f32 %v249, %v268
    %270 = vmatmul.f32.gmra.mxu0 %v216
    %v271 = vpop.f32.mrf.mxu0
    %v272 = vadd.f32 %v249, %v271
    %273 = vmatmul.f32.gmra.mxu0 %v217
    %v274 = vpop.f32.mrf.mxu0
    %v275 = vadd.f32 %v249, %v274
    %276 = vmatmul.f32.gmra.mxu0 %v218
    %v277 = vpop.f32.mrf.mxu0
    %v278 = vadd.f32 %v249, %v277
    %279 = vmatmul.f32.gmra.mxu0 %v219
    %v280 = vpop.f32.mrf.mxu0
    %v281 = vadd.f32 %v249, %v280
    %282 = vmatmul.f32.gmra.mxu0 %v220
    %v283 = vpop.f32.mrf.mxu0
    %v284 = vadd.f32 %v249, %v283
    %285 = vmatmul.f32.gmra.mxu0 %v221
    %v286 = vpop.f32.mrf.mxu0
    %v287 = vadd.f32 %v249, %v286
    %288 = vmatmul.f32.gmra.mxu0 %v222
    %v289 = vpop.f32.mrf.mxu0
    %v290 = vadd.f32 %v249, %v289
    %291 = vmatmul.f32.gmra.mxu0 %v223
    %v292 = vpop.f32.mrf.mxu0
    %v293 = vadd.f32 %v249, %v292
    %294 = vmatmul.f32.gmra.mxu0 %v224
    %v295 = vpop.f32.mrf.mxu0
    %v296 = vadd.f32 %v249, %v295
    %297 = vmatmul.f32.gmra.mxu0 %v225
    %v298 = vpop.f32.mrf.mxu0
    %v299 = vadd.f32 %v249, %v298
    %300 = vmatmul.f32.gmra.mxu0 %v226
    %v301 = vpop.f32.mrf.mxu0
    %v302 = vadd.f32 %v249, %v301
    %303 = vmatmul.f32.gmra.mxu0 %v227
    %v304 = vpop.f32.mrf.mxu0
    %v305 = vadd.f32 %v249, %v304
    %306 = vmatmul.f32.gmra.mxu0 %v228
    %v307 = vpop.f32.mrf.mxu0
    %v308 = vadd.f32 %v249, %v307
    %309 = vmatmul.f32.gmra.mxu0 %v229
    %v310 = vpop.f32.mrf.mxu0
    %v311 = vadd.f32 %v249, %v310
    %312 = vmatmul.f32.gmra.mxu0 %v230
    %v313 = vpop.f32.mrf.mxu0
    %v314 = vadd.f32 %v249, %v313
    %315 = vdwg.mxu0
    %v316 = vmax.f32 %v269, 0.0
    %v317 = vmax.f32 %v272, 0.0
    %v318 = vmax.f32 %v275, 0.0
    %v319 = vmax.f32 %v278, 0.0
    %v320 = vmax.f32 %v281, 0.0
    %v321 = vmax.f32 %v284, 0.0
    %v322 = vmax.f32 %v287, 0.0
    %v323 = vmax.f32 %v290, 0.0
    %v324 = vmax.f32 %v293, 0.0
    %v325 = vmax.f32 %v296, 0.0
    %v326 = vmax.f32 %v299, 0.0
    %v327 = vmax.f32 %v302, 0.0
    %v328 = vmax.f32 %v305, 0.0
    %v329 = vmax.f32 %v308, 0.0
    %v330 = vmax.f32 %v311, 0.0
    %v331 = vmax.f32 %v314, 0.0
    %v332 = vld [vmem:[#allocation10] sm:$0xff]
    %v333 = vld [vmem:[#allocation10 + $0x8] sm:$0xff]
    %v334 = vld [vmem:[#allocation10 + $0x10] sm:$0xff]
    %v335 = vld [vmem:[#allocation10 + $0x18] sm:$0xff]
    %v336 = vld [vmem:[#allocation10 + $0x20] sm:$0xff]
    %v337 = vld [vmem:[#allocation10 + $0x28] sm:$0xff]
    %v338 = vld [vmem:[#allocation10 + $0x30] sm:$0xff]
    %v339 = vld [vmem:[#allocation10 + $0x38] sm:$0xff]
    %v340 = vld [vmem:[#allocation10 + $0x40] sm:$0xff]
    %v341 = vld [vmem:[#allocation10 + $0x48] sm:$0xff]
    %v342 = vld [vmem:[#allocation10 + $0x50] sm:$0xff]
    %v343 = vld [vmem:[#allocation10 + $0x58] sm:$0xff]
    %v344 = vld [vmem:[#allocation10 + $0x60] sm:$0xff]
    %v345 = vld [vmem:[#allocation10 + $0x68] sm:$0xff]
    %v346 = vld [vmem:[#allocation10 + $0x70] sm:$0xff]
    %v347 = vld [vmem:[#allocation10 + $0x78] sm:$0xff]
    %v348 = vld [vmem:[%s8] sm:$0x1]
    %v350 = vperm.slane %v348, 0
    %352 = vmatpush.msra.mxu0 %v347
    %353 = vmatpush.msra.mxu0 %v346
    %354 = vmatpush.msra.mxu0 %v345
    %355 = vmatpush.msra.mxu0 %v344
    %356 = vmatpush.msra.mxu0 %v343
    %357 = vmatpush.msra.mxu0 %v342
    %358 = vmatpush.msra.mxu0 %v341
    %359 = vmatpush.msra.mxu0 %v340
    %360 = vmatpush.msra.mxu0 %v339
    %361 = vmatpush.msra.mxu0 %v338
    %362 = vmatpush.msra.mxu0 %v337
    %363 = vmatpush.msra.mxu0 %v336
    %364 = vmatpush.msra.mxu0 %v335
    %365 = vmatpush.msra.mxu0 %v334
    %366 = vmatpush.msra.mxu0 %v333
    %367 = vmatpush.msra.mxu0 %v332
    %368 = vmatmul.f32.gmra.mxu0 %v316
    %v369 = vpop.f32.mrf.mxu0
    %v370 = vadd.f32 %v350, %v369
    %371 = vmatmul.f32.gmra.mxu0 %v317
    %v372 = vpop.f32.mrf.mxu0
    %v373 = vadd.f32 %v350, %v372
    %374 = vmatmul.f32.gmra.mxu0 %v318
    %v375 = vpop.f32.mrf.mxu0
    %v376 = vadd.f32 %v350, %v375
    %377 = vmatmul.f32.gmra.mxu0 %v319
    %v378 = vpop.f32.mrf.mxu0
    %v379 = vadd.f32 %v350, %v378
    %380 = vmatmul.f32.gmra.mxu0 %v320
    %v381 = vpop.f32.mrf.mxu0
    %v382 = vadd.f32 %v350, %v381
    %383 = vmatmul.f32.gmra.mxu0 %v321
    %v384 = vpop.f32.mrf.mxu0
    %v385 = vadd.f32 %v350, %v384
    %386 = vmatmul.f32.gmra.mxu0 %v322
    %v387 = vpop.f32.mrf.mxu0
    %v388 = vadd.f32 %v350, %v387
    %389 = vmatmul.f32.gmra.mxu0 %v323
    %v390 = vpop.f32.mrf.mxu0
    %v391 = vadd.f32 %v350, %v390
    %392 = vmatmul.f32.gmra.mxu0 %v324
    %v393 = vpop.f32.mrf.mxu0
    %v394 = vadd.f32 %v350, %v393
    %395 = vmatmul.f32.gmra.mxu0 %v325
    %v396 = vpop.f32.mrf.mxu0
    %v397 = vadd.f32 %v350, %v396
    %398 = vmatmul.f32.gmra.mxu0 %v326
    %v399 = vpop.f32.mrf.mxu0
    %v400 = vadd.f32 %v350, %v399
    %401 = vmatmul.f32.gmra.mxu0 %v327
    %v402 = vpop.f32.mrf.mxu0
    %v403 = vadd.f32 %v350, %v402
    %404 = vmatmul.f32.gmra.mxu0 %v328
    %v405 = vpop.f32.mrf.mxu0
    %v406 = vadd.f32 %v350, %v405
    %407 = vmatmul.f32.gmra.mxu0 %v329
    %v408 = vpop.f32.mrf.mxu0
    %v409 = vadd.f32 %v350, %v408
    %410 = vmatmul.f32.gmra.mxu0 %v330
    %v411 = vpop.f32.mrf.mxu0
    %v412 = vadd.f32 %v350, %v411
    %413 = vmatmul.f32.gmra.mxu0 %v331
    %v414 = vpop.f32.mrf.mxu0
    %v415 = vadd.f32 %v350, %v414
    %416 = vdwg.mxu0
    %417 = vmatpush.xpose.msra.mxu0 %v415
    %418 = vmatpush.xpose.msra.mxu0 %v412
    %419 = vmatpush.xpose.msra.mxu0 %v409
    %420 = vmatpush.xpose.msra.mxu0 %v406
    %421 = vmatpush.xpose.msra.mxu0 %v403
    %422 = vmatpush.xpose.msra.mxu0 %v400
    %423 = vmatpush.xpose.msra.mxu0 %v397
    %424 = vmatpush.xpose.msra.mxu0 %v394
    %425 = vmatpush.xpose.msra.mxu0 %v391
    %426 = vmatpush.xpose.msra.mxu0 %v388
    %427 = vmatpush.xpose.msra.mxu0 %v385
    %428 = vmatpush.xpose.msra.mxu0 %v382
    %429 = vmatpush.xpose.msra.mxu0 %v379
    %430 = vmatpush.xpose.msra.mxu0 %v376
    %431 = vmatpush.xpose.msra.mxu0 %v373
    %432 = vmatpush.xpose.msra.mxu0 %v370
    %433 = vmatmul.f32.gmra.mxu0 1.0
    %v434 = vpop.f32.mrf.mxu0
    %v435 = vadd.f32 0.0, %v434
    %436 = vdwg.mxu0
    %v437 = vsub.f32 0.0, %v435
    %438 = vst [vmem:[#allocation12] sm:$0xff] %v437
    %v439 = vsub.f32 0.0, %v370
    %v440 = vsub.f32 0.0, %v373
    %v441 = vsub.f32 0.0, %v376
    %v442 = vsub.f32 0.0, %v379
    %v443 = vsub.f32 0.0, %v382
    %v444 = vsub.f32 0.0, %v385
    %v445 = vsub.f32 0.0, %v388
    %v446 = vsub.f32 0.0, %v391
    %v447 = vsub.f32 0.0, %v394
    %v448 = vsub.f32 0.0, %v397
    %v449 = vsub.f32 0.0, %v400
    %v450 = vsub.f32 0.0, %v403
    %v451 = vsub.f32 0.0, %v406
    %v452 = vsub.f32 0.0, %v409
    %v453 = vsub.f32 0.0, %v412
    %v454 = vsub.f32 0.0, %v415
    %v455 = vmul.f32 %v439, 1.442695
    %v456 = vpow.pop %v455
    %v457 = vmul.f32 %v440, 1.442695
    %v458 = vpow.pop %v457
    %v459 = vmul.f32 %v441, 1.442695
    %v460 = vpow.pop %v459
    %v461 = vmul.f32 %v442, 1.442695
    %v462 = vpow.pop %v461
    %v463 = vmul.f32 %v443, 1.442695
    %v464 = vpow.pop %v463
    %v465 = vmul.f32 %v444, 1.442695
    %v466 = vpow.pop %v465
    %v467 = vmul.f32 %v445, 1.442695
    %v468 = vpow.pop %v467
    %v469 = vmul.f32 %v446, 1.442695
    %v470 = vpow.pop %v469
    %v471 = vmul.f32 %v447, 1.442695
    %v472 = vpow.pop %v471
    %v473 = vmul.f32 %v448, 1.442695
    %v474 = vpow.pop %v473
    %v475 = vmul.f32 %v449, 1.442695
    %v476 = vpow.pop %v475
    %v477 = vmul.f32 %v450, 1.442695
    %v478 = vpow.pop %v477
    %v479 = vmul.f32 %v451, 1.442695
    %v480 = vpow.pop %v479
    %v481 = vmul.f32 %v452, 1.442695
    %v482 = vpow.pop %v481
    %v483 = vmul.f32 %v453, 1.442695
    %v484 = vpow.pop %v483
    %v485 = vmul.f32 %v454, 1.442695
    %v486 = vpow.pop %v485
    %v487 = vld [vmem:[#allocation8] sm:$0xff]
    %v488 = vld [vmem:[#allocation8 + $0x8] sm:$0xff]
    %v489 = vld [vmem:[#allocation8 + $0x10] sm:$0xff]
    %v490 = vld [vmem:[#allocation8 + $0x18] sm:$0xff]
    %v491 = vld [vmem:[#allocation8 + $0x20] sm:$0xff]
    %v492 = vld [vmem:[#allocation8 + $0x28] sm:$0xff]
    %v493 = vld [vmem:[#allocation8 + $0x30] sm:$0xff]
    %v494 = vld [vmem:[#allocation8 + $0x38] sm:$0xff]
    %v495 = vld [vmem:[#allocation8 + $0x40] sm:$0xff]
    %v496 = vld [vmem:[#allocation8 + $0x48] sm:$0xff]
    %v497 = vld [vmem:[#allocation8 + $0x50] sm:$0xff]
    %v498 = vld [vmem:[#allocation8 + $0x58] sm:$0xff]
    %v499 = vld [vmem:[#allocation8 + $0x60] sm:$0xff]
    %v500 = vld [vmem:[#allocation8 + $0x68] sm:$0xff]
    %v501 = vld [vmem:[#allocation8 + $0x70] sm:$0xff]
    %v502 = vld [vmem:[#allocation8 + $0x78] sm:$0xff]
    %v503 = vld [vmem:[%s6] sm:$0x1]
    %v505 = vperm.slane %v503, 0
    %507 = vmatpush.msra.mxu0 %v502
    %508 = vmatpush.msra.mxu0 %v501
    %509 = vmatpush.msra.mxu0 %v500
    %510 = vmatpush.msra.mxu0 %v499
    %511 = vmatpush.msra.mxu0 %v498
    %512 = vmatpush.msra.mxu0 %v497
    %513 = vmatpush.msra.mxu0 %v496
    %514 = vmatpush.msra.mxu0 %v495
    %515 = vmatpush.msra.mxu0 %v494
    %516 = vmatpush.msra.mxu0 %v493
    %517 = vmatpush.msra.mxu0 %v492
    %518 = vmatpush.msra.mxu0 %v491
    %519 = vmatpush.msra.mxu0 %v490
    %520 = vmatpush.msra.mxu0 %v489
    %521 = vmatpush.msra.mxu0 %v488
    %522 = vmatpush.msra.mxu0 %v487
    %523 = vmatmul.f32.gmra.mxu0 %v316
    %v524 = vpop.f32.mrf.mxu0
    %v525 = vadd.f32 %v505, %v524
    %526 = vmatmul.f32.gmra.mxu0 %v317
    %v527 = vpop.f32.mrf.mxu0
    %v528 = vadd.f32 %v505, %v527
    %529 = vmatmul.f32.gmra.mxu0 %v318
    %v530 = vpop.f32.mrf.mxu0
    %v531 = vadd.f32 %v505, %v530
    %532 = vmatmul.f32.gmra.mxu0 %v319
    %v533 = vpop.f32.mrf.mxu0
    %v534 = vadd.f32 %v505, %v533
    %535 = vmatmul.f32.gmra.mxu0 %v320
    %v536 = vpop.f32.mrf.mxu0
    %v537 = vadd.f32 %v505, %v536
    %538 = vmatmul.f32.gmra.mxu0 %v321
    %v539 = vpop.f32.mrf.mxu0
    %v540 = vadd.f32 %v505, %v539
    %541 = vmatmul.f32.gmra.mxu0 %v322
    %v542 = vpop.f32.mrf.mxu0
    %v543 = vadd.f32 %v505, %v542
    %544 = vmatmul.f32.gmra.mxu0 %v323
    %v545 = vpop.f32.mrf.mxu0
    %v546 = vadd.f32 %v505, %v545
    %547 = vmatmul.f32.gmra.mxu0 %v324
    %v548 = vpop.f32.mrf.mxu0
    %v549 = vadd.f32 %v505, %v548
    %550 = vmatmul.f32.gmra.mxu0 %v325
    %v551 = vpop.f32.mrf.mxu0
    %v552 = vadd.f32 %v505, %v551
    %553 = vmatmul.f32.gmra.mxu0 %v326
    %v554 = vpop.f32.mrf.mxu0
    %v555 = vadd.f32 %v505, %v554
    %556 = vmatmul.f32.gmra.mxu0 %v327
    %v557 = vpop.f32.mrf.mxu0
    %v558 = vadd.f32 %v505, %v557
    %559 = vmatmul.f32.gmra.mxu0 %v328
    %v560 = vpop.f32.mrf.mxu0
    %v561 = vadd.f32 %v505, %v560
    %562 = vmatmul.f32.gmra.mxu0 %v329
    %v563 = vpop.f32.mrf.mxu0
    %v564 = vadd.f32 %v505, %v563
    %565 = vmatmul.f32.gmra.mxu0 %v330
    %v566 = vpop.f32.mrf.mxu0
    %v567 = vadd.f32 %v505, %v566
    %568 = vmatmul.f32.gmra.mxu0 %v331
    %v569 = vpop.f32.mrf.mxu0
    %v570 = vadd.f32 %v505, %v569
    %571 = vdwg.mxu0
    %v572 = vsub.f32 %v114, %v525
    %v573 = vsub.f32 %v115, %v528
    %v574 = vsub.f32 %v116, %v531
    %v575 = vsub.f32 %v117, %v534
    %v576 = vsub.f32 %v118, %v537
    %v577 = vsub.f32 %v119, %v540
    %v578 = vsub.f32 %v120, %v543
    %v579 = vsub.f32 %v121, %v546
    %v580 = vsub.f32 %v122, %v549
    %v581 = vsub.f32 %v123, %v552
    %v582 = vsub.f32 %v124, %v555
    %v583 = vsub.f32 %v125, %v558
    %v584 = vsub.f32 %v126, %v561
    %v585 = vsub.f32 %v127, %v564
    %v586 = vsub.f32 %v128, %v567
    %v587 = vsub.f32 %v129, %v570
    %v588 = vmul.f32 %v572, %v456
    %v589 = vmul.f32 %v573, %v458
    %v590 = vmul.f32 %v574, %v460
    %v591 = vmul.f32 %v575, %v462
    %v592 = vmul.f32 %v576, %v464
    %v593 = vmul.f32 %v577, %v466
    %v594 = vmul.f32 %v578, %v468
    %v595 = vmul.f32 %v579, %v470
    %v596 = vmul.f32 %v580, %v472
    %v597 = vmul.f32 %v581, %v474
    %v598 = vmul.f32 %v582, %v476
    %v599 = vmul.f32 %v583, %v478
    %v600 = vmul.f32 %v584, %v480
    %v601 = vmul.f32 %v585, %v482
    %v602 = vmul.f32 %v586, %v484
    %v603 = vmul.f32 %v587, %v486
    %604 = vst [vmem:[#allocation11] sm:$0xff] %v588
    %605 = vst [vmem:[#allocation11 + $0x8] sm:$0xff] %v589
    %606 = vst [vmem:[#allocation11 + $0x10] sm:$0xff] %v590
    %607 = vst [vmem:[#allocation11 + $0x18] sm:$0xff] %v591
    %608 = vst [vmem:[#allocation11 + $0x20] sm:$0xff] %v592
    %609 = vst [vmem:[#allocation11 + $0x28] sm:$0xff] %v593
    %610 = vst [vmem:[#allocation11 + $0x30] sm:$0xff] %v594
    %611 = vst [vmem:[#allocation11 + $0x38] sm:$0xff] %v595
    %612 = vst [vmem:[#allocation11 + $0x40] sm:$0xff] %v596
    %613 = vst [vmem:[#allocation11 + $0x48] sm:$0xff] %v597
    %614 = vst [vmem:[#allocation11 + $0x50] sm:$0xff] %v598
    %615 = vst [vmem:[#allocation11 + $0x58] sm:$0xff] %v599
    %616 = vst [vmem:[#allocation11 + $0x60] sm:$0xff] %v600
    %617 = vst [vmem:[#allocation11 + $0x68] sm:$0xff] %v601
    %618 = vst [vmem:[#allocation11 + $0x70] sm:$0xff] %v602
    %619 = vst [vmem:[#allocation11 + $0x78] sm:$0xff] %v603
    // Predicated region
    $region58: #{tpu_custom_call.1} parent=1 // pred_check
      _
    $region59: #{tpu_custom_call.1} parent=1 // pred_check_branch
      %621 = sbr.rel (0) target = $region61
    $region60: #{tpu_custom_call.1} parent=1 // pred_region
      %623 = vsyncadd [#allocation4], 0
      %s624 = sshll.u32 [#allocation11], 4
      %s625 = int_to_ptr.vmem [resolvable:$true] %s624
      %s626 = sshll.u32 %s9, 4
      %s627 = int_to_ptr.hbm [resolvable:$true] %s626
      %632 = dma.vmem_to_hbm [thread:$0]  %s625, 2048, %s627, [#allocation4], 128, 128, 8
    $region61: #{tpu_custom_call.1} parent=1 // pred_fallthru
      _
    // Predicated region
    $region62: #{tpu_custom_call.1} parent=1 // pred_check
      _
    $region63: #{tpu_custom_call.1} parent=1 // pred_check_branch
      %634 = sbr.rel (0) target = $region65
    $region64: #{tpu_custom_call.1} parent=1 // pred_region
      %636 = vsyncadd [#allocation13], 0
      %s638 = sshll.u32 [#allocation12], 4
      %s639 = int_to_ptr.vmem [resolvable:$true] %s638
      %s640 = sshll.u32 %s10, 4
      %s641 = int_to_ptr.hbm [resolvable:$true] %s640
      %643 = dma.vmem_to_hbm [thread:$0]  %s639, 128, %s641, [#allocation13]
    $region65: #{tpu_custom_call.1} parent=1 // pred_fallthru
      _
    // Predicated region
    $region66: #{tpu_custom_call.1} parent=1 // pred_check
      _
    $region67: #{tpu_custom_call.1} parent=1 // pred_check_branch
      %645 = sbr.rel (0) target = $region69
    $region68: #{tpu_custom_call.1} parent=1 // pred_region
      %647 = dma.done [#allocation4], 2048
    $region69: #{tpu_custom_call.1} parent=1 // pred_fallthru
      _
    // Predicated region
    $region70: #{tpu_custom_call.1} parent=1 // pred_check
      _
    $region71: #{tpu_custom_call.1} parent=1 // pred_check_branch
      %649 = sbr.rel (0) target = $region73
    $region72: #{tpu_custom_call.1} parent=1 // pred_region
      %651 = dma.done [#allocation13], 128
    $region73: #{tpu_custom_call.1} parent=1 // pred_fallthru
      _
    %652 = vsyncpa [#allocation3], 1
    %653 = vsyncpa [#allocation6], 1
    %654 = vsyncpa [#allocation9], 1
    %655 = vsyncpa [#allocation4], 1
    %656 = vsyncpa [#allocation13], 1

// kernel: tpu_custom_call.1
$region0: #{tpu_custom_call.1}
  #allocation0 [shape = 'u32[]', space=smem, size = 0x4, offset = 0x4, fixed_abs, tag = 'smem constant byte address 0x4 - core index']
  #allocation1 [shape = 'u32[72,128]{1,0:T(1,128)}', space=vmem, size = 0x9000, scoped, tag = 'internal scratch']
  %s0 = inlined_call_operand.hbm [shape: f32[128,128], index: 0, kind: input, shape index: {}]
  %s1 = inlined_call_operand.hbm [shape: f32[128,128], index: 1, kind: input, shape index: {}]
  %s2 = inlined_call_operand.vmem [shape: f32[1,128], index: 2, kind: input, shape index: {}]
  %s3 = inlined_call_operand.hbm [shape: f32[128,128], index: 3, kind: input, shape index: {}]
  %s4 = inlined_call_operand.vmem [shape: f32[1,128], index: 4, kind: input, shape index: {}]
  %s5 = inlined_call_operand.hbm [shape: f32[128,128], index: 5, kind: input, shape index: {}]
  %s6 = inlined_call_operand.vmem [shape: f32[1,128], index: 6, kind: input, shape index: {}]
  %s7 = inlined_call_operand.hbm [shape: f32[128,128], index: 7, kind: input, shape index: {}]
  %s8 = inlined_call_operand.vmem [shape: f32[1,128], index: 8, kind: input, shape index: {}]
  %s9 = inlined_call_operand.hbm [shape: f32[128,128], index: 9, kind: output, shape index: {0}]
  %s10 = inlined_call_operand.hbm [shape: f32[8,128], index: 10, kind: output, shape index: {1}]
  %11 = xla_tuple %s9, %s10
  %s12 = sld [smem:[#allocation0]]
  $region74: #{tpu_custom_call.1} parent=0
    _
  %s14 = ssub.s32 1, %s12
  %s15 = scalar_select 0, %s14, %s12
  $region1: #{tpu_custom_call.1} parent=0
    #allocation2 [shape = 'u8[65536]{0}', space=vmem, size = 0x10000, scoped, tag = 'input window, operand 0, single buffered']
    #allocation3 [shape = 's32[1]{0}', space=sflag, size = 0x4, scoped, tag = 'scoped memory for tpu_custom_call.1']
    #allocation4 [shape = 's32[1]{0}', space=sflag, size = 0x4, scoped, tag = 'scoped memory for tpu_custom_call.1']
    #allocation5 [shape = 'u8[65536]{0}', space=vmem, size = 0x10000, scoped, tag = 'input window, operand 1, single buffered']
    #allocation6 [shape = 's32[1]{0}', space=sflag, size = 0x4, scoped, tag = 'scoped memory for tpu_custom_call.1']
    #allocation7 [shape = 'u8[65536]{0}', space=vmem, size = 0x10000, scoped, tag = 'input window, operand 3, single buffered']
    #allocation8 [shape = 'u8[65536]{0}', space=vmem, size = 0x10000, scoped, tag = 'input window, operand 5, single buffered']
    #allocation9 [shape = 's32[1]{0}', space=sflag, size = 0x4, scoped, tag = 'scoped memory for tpu_custom_call.1']
    #allocation10 [shape = 'u8[65536]{0}', space=vmem, size = 0x10000, scoped, tag = 'input window, operand 7, single buffered']
    #allocation11 [shape = 'u8[65536]{0}', space=vmem, size = 0x10000, scoped, tag = 'output window, operand 0, single buffered']
    #allocation12 [shape = 'u8[4096]{0}', space=vmem, size = 0x1000, scoped, tag = 'output window, operand 1, single buffered']
    #allocation13 [shape = 's32[1]{0}', space=sflag, size = 0x4, scoped, tag = 'scoped memory for tpu_custom_call.1']
    %16 = vsyncpa [#allocation3], 0
    %17 = vsyncpa [#allocation6], 0
    %18 = vsyncpa [#allocation9], 0
    %19 = vsyncpa [#allocation4], 0
    %20 = vsyncpa [#allocation13], 0
    // Predicated region
    $region2: #{tpu_custom_call.1} parent=1 // pred_check
      _
    $region3: #{tpu_custom_call.1} parent=1 // pred_check_branch
      %22 = sbr.rel (0) target = $region5
    $region4: #{tpu_custom_call.1} parent=1 // pred_region
      %24 = vsyncadd [#allocation3], 0
      %s25 = sshll.u32 %s0, 4
      %s26 = int_to_ptr.hbm [resolvable:$true] %s25
      %s27 = sshll.u32 [#allocation2], 4
      %s28 = int_to_ptr.vmem [resolvable:$true] %s27
      %33 = dma.hbm_to_vmem [thread:$0]  %s26, 2048, %s28, [#allocation3], 128, 128, 8
    $region5: #{tpu_custom_call.1} parent=1 // pred_fallthru
      _
    // Predicated region
    $region6: #{tpu_custom_call.1} parent=1 // pred_check
      _
    $region7: #{tpu_custom_call.1} parent=1 // pred_check_branch
      %35 = sbr.rel (0) target = $region9
    $region8: #{tpu_custom_call.1} parent=1 // pred_region
      %37 = vsyncadd [#allocation6], 0
      %s38 = sshll.u32 %s1, 4
      %s39 = int_to_ptr.hbm [resolvable:$true] %s38
      %s40 = sshll.u32 [#allocation5], 4
      %s41 = int_to_ptr.vmem [resolvable:$true] %s40
      %46 = dma.hbm_to_vmem [thread:$0]  %s39, 2048, %s41, [#allocation6], 128, 128, 8
    $region9: #{tpu_custom_call.1} parent=1 // pred_fallthru
      _
    // Predicated region
    $region10: #{tpu_custom_call.1} parent=1 // pred_check
      _
    $region11: #{tpu_custom_call.1} parent=1 // pred_check_branch
      %48 = sbr.rel (0) target = $region13
    $region12: #{tpu_custom_call.1} parent=1 // pred_region
      _
    $region13: #{tpu_custom_call.1} parent=1 // pred_fallthru
      _
    // Predicated region
    $region14: #{tpu_custom_call.1} parent=1 // pred_check
      _
    $region15: #{tpu_custom_call.1} parent=1 // pred_check_branch
      %50 = sbr.rel (0) target = $region17
    $region16: #{tpu_custom_call.1} parent=1 // pred_region
      %52 = vsyncadd [#allocation6], 0
      %s53 = sshll.u32 %s3, 4
      %s54 = int_to_ptr.hbm [resolvable:$true] %s53
      %s55 = sshll.u32 [#allocation7], 4
      %s56 = int_to_ptr.vmem [resolvable:$true] %s55
      %61 = dma.hbm_to_vmem [thread:$0]  %s54, 2048, %s56, [#allocation6], 128, 128, 8
    $region17: #{tpu_custom_call.1} parent=1 // pred_fallthru
      _
    // Predicated region
    $region18: #{tpu_custom_call.1} parent=1 // pred_check
      _
    $region19: #{tpu_custom_call.1} parent=1 // pred_check_branch
      %63 = sbr.rel (0) target = $region21
    $region20: #{tpu_custom_call.1} parent=1 // pred_region
      _
    $region21: #{tpu_custom_call.1} parent=1 // pred_fallthru
      _
    // Predicated region
    $region22: #{tpu_custom_call.1} parent=1 // pred_check
      _
    $region23: #{tpu_custom_call.1} parent=1 // pred_check_branch
      %65 = sbr.rel (0) target = $region25
    $region24: #{tpu_custom_call.1} parent=1 // pred_region
      %67 = vsyncadd [#allocation9], 0
      %s68 = sshll.u32 %s5, 4
      %s69 = int_to_ptr.hbm [resolvable:$true] %s68
      %s70 = sshll.u32 [#allocation8], 4
      %s71 = int_to_ptr.vmem [resolvable:$true] %s70
      %76 = dma.hbm_to_vmem [thread:$0]  %s69, 2048, %s71, [#allocation9], 128, 128, 8
    $region25: #{tpu_custom_call.1} parent=1 // pred_fallthru
      _
    // Predicated region
    $region26: #{tpu_custom_call.1} parent=1 // pred_check
      _
    $region27: #{tpu_custom_call.1} parent=1 // pred_check_branch
      %78 = sbr.rel (0) target = $region29
    $region28: #{tpu_custom_call.1} parent=1 // pred_region
      _
    $region29: #{tpu_custom_call.1} parent=1 // pred_fallthru
      _
    // Predicated region
    $region30: #{tpu_custom_call.1} parent=1 // pred_check
      _
    $region31: #{tpu_custom_call.1} parent=1 // pred_check_branch
      %80 = sbr.rel (0) target = $region33
    $region32: #{tpu_custom_call.1} parent=1 // pred_region
      %82 = vsyncadd [#allocation9], 0
      %s83 = sshll.u32 %s7, 4
      %s84 = int_to_ptr.hbm [resolvable:$true] %s83
      %s85 = sshll.u32 [#allocation10], 4
      %s86 = int_to_ptr.vmem [resolvable:$true] %s85
      %91 = dma.hbm_to_vmem [thread:$0]  %s84, 2048, %s86, [#allocation9], 128, 128, 8
    $region33: #{tpu_custom_call.1} parent=1 // pred_fallthru
      _
    // Predicated region
    $region34: #{tpu_custom_call.1} parent=1 // pred_check
      _
    $region35: #{tpu_custom_call.1} parent=1 // pred_check_branch
      %93 = sbr.rel (0) target = $region37
    $region36: #{tpu_custom_call.1} parent=1 // pred_region
      _
    $region37: #{tpu_custom_call.1} parent=1 // pred_fallthru
      _
    // Predicated region
    $region38: #{tpu_custom_call.1} parent=1 // pred_check
      _
    $region39: #{tpu_custom_call.1} parent=1 // pred_check_branch
      %95 = sbr.rel (0) target = $region41
    $region40: #{tpu_custom_call.1} parent=1 // pred_region
      %97 = dma.done [#allocation3], 2048
    $region41: #{tpu_custom_call.1} parent=1 // pred_fallthru
      _
    // Predicated region
    $region42: #{tpu_custom_call.1} parent=1 // pred_check
      _
    $region43: #{tpu_custom_call.1} parent=1 // pred_check_branch
      %99 = sbr.rel (0) target = $region45
    $region44: #{tpu_custom_call.1} parent=1 // pred_region
      %101 = dma.done [#allocation6], 2048
    $region45: #{tpu_custom_call.1} parent=1 // pred_fallthru
      _
    // Predicated region
    $region46: #{tpu_custom_call.1} parent=1 // pred_check
      _
    $region47: #{tpu_custom_call.1} parent=1 // pred_check_branch
      %103 = sbr.rel (0) target = $region49
    $region48: #{tpu_custom_call.1} parent=1 // pred_region
      %105 = dma.done [#allocation6], 2048
    $region49: #{tpu_custom_call.1} parent=1 // pred_fallthru
      _
    // Predicated region
    $region50: #{tpu_custom_call.1} parent=1 // pred_check
      _
    $region51: #{tpu_custom_call.1} parent=1 // pred_check_branch
      %107 = sbr.rel (0) target = $region53
    $region52: #{tpu_custom_call.1} parent=1 // pred_region
      %109 = dma.done [#allocation9], 2048
    $region53: #{tpu_custom_call.1} parent=1 // pred_fallthru
      _
    // Predicated region
    $region54: #{tpu_custom_call.1} parent=1 // pred_check
      _
    $region55: #{tpu_custom_call.1} parent=1 // pred_check_branch
      %111 = sbr.rel (0) target = $region57
    $region56: #{tpu_custom_call.1} parent=1 // pred_region
      %113 = dma.done [#allocation9], 2048
    $region57: #{tpu_custom_call.1} parent=1 // pred_fallthru
      _
    %v114 = vld [vmem:[#allocation2] sm:$0xff]
    %v115 = vld [vmem:[#allocation2 + $0x8] sm:$0xff]
    %v116 = vld [vmem:[#allocation2 + $0x10] sm:$0xff]
    %v117 = vld [vmem:[#allocation2 + $0x18] sm:$0xff]
    %v118 = vld [vmem:[#allocation2 + $0x20] sm:$0xff]
    %v119 = vld [vmem:[#allocation2 + $0x28] sm:$0xff]
    %v120 = vld [vmem:[#allocation2 + $0x30] sm:$0xff]
    %v121 = vld [vmem:[#allocation2 + $0x38] sm:$0xff]
    %v122 = vld [vmem:[#allocation2 + $0x40] sm:$0xff]
    %v123 = vld [vmem:[#allocation2 + $0x48] sm:$0xff]
    %v124 = vld [vmem:[#allocation2 + $0x50] sm:$0xff]
    %v125 = vld [vmem:[#allocation2 + $0x58] sm:$0xff]
    %v126 = vld [vmem:[#allocation2 + $0x60] sm:$0xff]
    %v127 = vld [vmem:[#allocation2 + $0x68] sm:$0xff]
    %v128 = vld [vmem:[#allocation2 + $0x70] sm:$0xff]
    %v129 = vld [vmem:[#allocation2 + $0x78] sm:$0xff]
    %v130 = vld [vmem:[#allocation5] sm:$0xff]
    %v131 = vld [vmem:[#allocation5 + $0x8] sm:$0xff]
    %v132 = vld [vmem:[#allocation5 + $0x10] sm:$0xff]
    %v133 = vld [vmem:[#allocation5 + $0x18] sm:$0xff]
    %v134 = vld [vmem:[#allocation5 + $0x20] sm:$0xff]
    %v135 = vld [vmem:[#allocation5 + $0x28] sm:$0xff]
    %v136 = vld [vmem:[#allocation5 + $0x30] sm:$0xff]
    %v137 = vld [vmem:[#allocation5 + $0x38] sm:$0xff]
    %v138 = vld [vmem:[#allocation5 + $0x40] sm:$0xff]
    %v139 = vld [vmem:[#allocation5 + $0x48] sm:$0xff]
    %v140 = vld [vmem:[#allocation5 + $0x50] sm:$0xff]
    %v141 = vld [vmem:[#allocation5 + $0x58] sm:$0xff]
    %v142 = vld [vmem:[#allocation5 + $0x60] sm:$0xff]
    %v143 = vld [vmem:[#allocation5 + $0x68] sm:$0xff]
    %v144 = vld [vmem:[#allocation5 + $0x70] sm:$0xff]
    %v145 = vld [vmem:[#allocation5 + $0x78] sm:$0xff]
    %v146 = vld [vmem:[%s2] sm:$0x1]
    %v148 = vperm.slane %v146, 0
    %150 = vmatpush.msra.mxu0 %v145
    %151 = vmatpush.msra.mxu0 %v144
    %152 = vmatpush.msra.mxu0 %v143
    %153 = vmatpush.msra.mxu0 %v142
    %154 = vmatpush.msra.mxu0 %v141
    %155 = vmatpush.msra.mxu0 %v140
    %156 = vmatpush.msra.mxu0 %v139
    %157 = vmatpush.msra.mxu0 %v138
    %158 = vmatpush.msra.mxu0 %v137
    %159 = vmatpush.msra.mxu0 %v136
    %160 = vmatpush.msra.mxu0 %v135
    %161 = vmatpush.msra.mxu0 %v134
    %162 = vmatpush.msra.mxu0 %v133
    %163 = vmatpush.msra.mxu0 %v132
    %164 = vmatpush.msra.mxu0 %v131
    %165 = vmatpush.msra.mxu0 %v130
    %166 = vmatmul.f32.gmra.mxu0 %v114
    %v167 = vpop.f32.mrf.mxu0
    %v168 = vadd.f32 %v148, %v167
    %169 = vmatmul.f32.gmra.mxu0 %v115
    %v170 = vpop.f32.mrf.mxu0
    %v171 = vadd.f32 %v148, %v170
    %172 = vmatmul.f32.gmra.mxu0 %v116
    %v173 = vpop.f32.mrf.mxu0
    %v174 = vadd.f32 %v148, %v173
    %175 = vmatmul.f32.gmra.mxu0 %v117
    %v176 = vpop.f32.mrf.mxu0
    %v177 = vadd.f32 %v148, %v176
    %178 = vmatmul.f32.gmra.mxu0 %v118
    %v179 = vpop.f32.mrf.mxu0
    %v180 = vadd.f32 %v148, %v179
    %181 = vmatmul.f32.gmra.mxu0 %v119
    %v182 = vpop.f32.mrf.mxu0
    %v183 = vadd.f32 %v148, %v182
    %184 = vmatmul.f32.gmra.mxu0 %v120
    %v185 = vpop.f32.mrf.mxu0
    %v186 = vadd.f32 %v148, %v185
    %187 = vmatmul.f32.gmra.mxu0 %v121
    %v188 = vpop.f32.mrf.mxu0
    %v189 = vadd.f32 %v148, %v188
    %190 = vmatmul.f32.gmra.mxu0 %v122
    %v191 = vpop.f32.mrf.mxu0
    %v192 = vadd.f32 %v148, %v191
    %193 = vmatmul.f32.gmra.mxu0 %v123
    %v194 = vpop.f32.mrf.mxu0
    %v195 = vadd.f32 %v148, %v194
    %196 = vmatmul.f32.gmra.mxu0 %v124
    %v197 = vpop.f32.mrf.mxu0
    %v198 = vadd.f32 %v148, %v197
    %199 = vmatmul.f32.gmra.mxu0 %v125
    %v200 = vpop.f32.mrf.mxu0
    %v201 = vadd.f32 %v148, %v200
    %202 = vmatmul.f32.gmra.mxu0 %v126
    %v203 = vpop.f32.mrf.mxu0
    %v204 = vadd.f32 %v148, %v203
    %205 = vmatmul.f32.gmra.mxu0 %v127
    %v206 = vpop.f32.mrf.mxu0
    %v207 = vadd.f32 %v148, %v206
    %208 = vmatmul.f32.gmra.mxu0 %v128
    %v209 = vpop.f32.mrf.mxu0
    %v210 = vadd.f32 %v148, %v209
    %211 = vmatmul.f32.gmra.mxu0 %v129
    %v212 = vpop.f32.mrf.mxu0
    %v213 = vadd.f32 %v148, %v212
    %214 = vdwg.mxu0
    %v215 = vmax.f32 %v168, 0.0
    %v216 = vmax.f32 %v171, 0.0
    %v217 = vmax.f32 %v174, 0.0
    %v218 = vmax.f32 %v177, 0.0
    %v219 = vmax.f32 %v180, 0.0
    %v220 = vmax.f32 %v183, 0.0
    %v221 = vmax.f32 %v186, 0.0
    %v222 = vmax.f32 %v189, 0.0
    %v223 = vmax.f32 %v192, 0.0
    %v224 = vmax.f32 %v195, 0.0
    %v225 = vmax.f32 %v198, 0.0
    %v226 = vmax.f32 %v201, 0.0
    %v227 = vmax.f32 %v204, 0.0
    %v228 = vmax.f32 %v207, 0.0
    %v229 = vmax.f32 %v210, 0.0
    %v230 = vmax.f32 %v213, 0.0
    %v231 = vld [vmem:[#allocation7] sm:$0xff]
    %v232 = vld [vmem:[#allocation7 + $0x8] sm:$0xff]
    %v233 = vld [vmem:[#allocation7 + $0x10] sm:$0xff]
    %v234 = vld [vmem:[#allocation7 + $0x18] sm:$0xff]
    %v235 = vld [vmem:[#allocation7 + $0x20] sm:$0xff]
    %v236 = vld [vmem:[#allocation7 + $0x28] sm:$0xff]
    %v237 = vld [vmem:[#allocation7 + $0x30] sm:$0xff]
    %v238 = vld [vmem:[#allocation7 + $0x38] sm:$0xff]
    %v239 = vld [vmem:[#allocation7 + $0x40] sm:$0xff]
    %v240 = vld [vmem:[#allocation7 + $0x48] sm:$0xff]
    %v241 = vld [vmem:[#allocation7 + $0x50] sm:$0xff]
    %v242 = vld [vmem:[#allocation7 + $0x58] sm:$0xff]
    %v243 = vld [vmem:[#allocation7 + $0x60] sm:$0xff]
    %v244 = vld [vmem:[#allocation7 + $0x68] sm:$0xff]
    %v245 = vld [vmem:[#allocation7 + $0x70] sm:$0xff]
    %v246 = vld [vmem:[#allocation7 + $0x78] sm:$0xff]
    %v247 = vld [vmem:[%s4] sm:$0x1]
    %v249 = vperm.slane %v247, 0
    %251 = vmatpush.msra.mxu0 %v246
    %252 = vmatpush.msra.mxu0 %v245
    %253 = vmatpush.msra.mxu0 %v244
    %254 = vmatpush.msra.mxu0 %v243
    %255 = vmatpush.msra.mxu0 %v242
    %256 = vmatpush.msra.mxu0 %v241
    %257 = vmatpush.msra.mxu0 %v240
    %258 = vmatpush.msra.mxu0 %v239
    %259 = vmatpush.msra.mxu0 %v238
    %260 = vmatpush.msra.mxu0 %v237
    %261 = vmatpush.msra.mxu0 %v236
    %262 = vmatpush.msra.mxu0 %v235
    %263 = vmatpush.msra.mxu0 %v234
    %264 = vmatpush.msra.mxu0 %v233
    %265 = vmatpush.msra.mxu0 %v232
    %266 = vmatpush.msra.mxu0 %v231
    %267 = vmatmul.f32.gmra.mxu0 %v215
    %v268 = vpop.f32.mrf.mxu0
    %v269 = vadd.f32 %v249, %v268
    %270 = vmatmul.f32.gmra.mxu0 %v216
    %v271 = vpop.f32.mrf.mxu0
    %v272 = vadd.f32 %v249, %v271
    %273 = vmatmul.f32.gmra.mxu0 %v217
    %v274 = vpop.f32.mrf.mxu0
    %v275 = vadd.f32 %v249, %v274
    %276 = vmatmul.f32.gmra.mxu0 %v218
    %v277 = vpop.f32.mrf.mxu0
    %v278 = vadd.f32 %v249, %v277
    %279 = vmatmul.f32.gmra.mxu0 %v219
    %v280 = vpop.f32.mrf.mxu0
    %v281 = vadd.f32 %v249, %v280
    %282 = vmatmul.f32.gmra.mxu0 %v220
    %v283 = vpop.f32.mrf.mxu0
    %v284 = vadd.f32 %v249, %v283
    %285 = vmatmul.f32.gmra.mxu0 %v221
    %v286 = vpop.f32.mrf.mxu0
    %v287 = vadd.f32 %v249, %v286
    %288 = vmatmul.f32.gmra.mxu0 %v222
    %v289 = vpop.f32.mrf.mxu0
    %v290 = vadd.f32 %v249, %v289
    %291 = vmatmul.f32.gmra.mxu0 %v223
    %v292 = vpop.f32.mrf.mxu0
    %v293 = vadd.f32 %v249, %v292
    %294 = vmatmul.f32.gmra.mxu0 %v224
    %v295 = vpop.f32.mrf.mxu0
    %v296 = vadd.f32 %v249, %v295
    %297 = vmatmul.f32.gmra.mxu0 %v225
    %v298 = vpop.f32.mrf.mxu0
    %v299 = vadd.f32 %v249, %v298
    %300 = vmatmul.f32.gmra.mxu0 %v226
    %v301 = vpop.f32.mrf.mxu0
    %v302 = vadd.f32 %v249, %v301
    %303 = vmatmul.f32.gmra.mxu0 %v227
    %v304 = vpop.f32.mrf.mxu0
    %v305 = vadd.f32 %v249, %v304
    %306 = vmatmul.f32.gmra.mxu0 %v228
    %v307 = vpop.f32.mrf.mxu0
    %v308 = vadd.f32 %v249, %v307
    %309 = vmatmul.f32.gmra.mxu0 %v229
    %v310 = vpop.f32.mrf.mxu0
    %v311 = vadd.f32 %v249, %v310
    %312 = vmatmul.f32.gmra.mxu0 %v230
    %v313 = vpop.f32.mrf.mxu0
    %v314 = vadd.f32 %v249, %v313
    %315 = vdwg.mxu0
    %v316 = vmax.f32 %v269, 0.0
    %v317 = vmax.f32 %v272, 0.0
    %v318 = vmax.f32 %v275, 0.0
    %v319 = vmax.f32 %v278, 0.0
    %v320 = vmax.f32 %v281, 0.0
    %v321 = vmax.f32 %v284, 0.0
    %v322 = vmax.f32 %v287, 0.0
    %v323 = vmax.f32 %v290, 0.0
    %v324 = vmax.f32 %v293, 0.0
    %v325 = vmax.f32 %v296, 0.0
    %v326 = vmax.f32 %v299, 0.0
    %v327 = vmax.f32 %v302, 0.0
    %v328 = vmax.f32 %v305, 0.0
    %v329 = vmax.f32 %v308, 0.0
    %v330 = vmax.f32 %v311, 0.0
    %v331 = vmax.f32 %v314, 0.0
    %v332 = vld [vmem:[#allocation10] sm:$0xff]
    %v333 = vld [vmem:[#allocation10 + $0x8] sm:$0xff]
    %v334 = vld [vmem:[#allocation10 + $0x10] sm:$0xff]
    %v335 = vld [vmem:[#allocation10 + $0x18] sm:$0xff]
    %v336 = vld [vmem:[#allocation10 + $0x20] sm:$0xff]
    %v337 = vld [vmem:[#allocation10 + $0x28] sm:$0xff]
    %v338 = vld [vmem:[#allocation10 + $0x30] sm:$0xff]
    %v339 = vld [vmem:[#allocation10 + $0x38] sm:$0xff]
    %v340 = vld [vmem:[#allocation10 + $0x40] sm:$0xff]
    %v341 = vld [vmem:[#allocation10 + $0x48] sm:$0xff]
    %v342 = vld [vmem:[#allocation10 + $0x50] sm:$0xff]
    %v343 = vld [vmem:[#allocation10 + $0x58] sm:$0xff]
    %v344 = vld [vmem:[#allocation10 + $0x60] sm:$0xff]
    %v345 = vld [vmem:[#allocation10 + $0x68] sm:$0xff]
    %v346 = vld [vmem:[#allocation10 + $0x70] sm:$0xff]
    %v347 = vld [vmem:[#allocation10 + $0x78] sm:$0xff]
    %v348 = vld [vmem:[%s8] sm:$0x1]
    %v350 = vperm.slane %v348, 0
    %352 = vmatpush.msra.mxu0 %v347
    %353 = vmatpush.msra.mxu0 %v346
    %354 = vmatpush.msra.mxu0 %v345
    %355 = vmatpush.msra.mxu0 %v344
    %356 = vmatpush.msra.mxu0 %v343
    %357 = vmatpush.msra.mxu0 %v342
    %358 = vmatpush.msra.mxu0 %v341
    %359 = vmatpush.msra.mxu0 %v340
    %360 = vmatpush.msra.mxu0 %v339
    %361 = vmatpush.msra.mxu0 %v338
    %362 = vmatpush.msra.mxu0 %v337
    %363 = vmatpush.msra.mxu0 %v336
    %364 = vmatpush.msra.mxu0 %v335
    %365 = vmatpush.msra.mxu0 %v334
    %366 = vmatpush.msra.mxu0 %v333
    %367 = vmatpush.msra.mxu0 %v332
    %368 = vmatmul.f32.gmra.mxu0 %v316
    %v369 = vpop.f32.mrf.mxu0
    %v370 = vadd.f32 %v350, %v369
    %371 = vmatmul.f32.gmra.mxu0 %v317
    %v372 = vpop.f32.mrf.mxu0
    %v373 = vadd.f32 %v350, %v372
    %374 = vmatmul.f32.gmra.mxu0 %v318
    %v375 = vpop.f32.mrf.mxu0
    %v376 = vadd.f32 %v350, %v375
    %377 = vmatmul.f32.gmra.mxu0 %v319
    %v378 = vpop.f32.mrf.mxu0
    %v379 = vadd.f32 %v350, %v378
    %380 = vmatmul.f32.gmra.mxu0 %v320
    %v381 = vpop.f32.mrf.mxu0
    %v382 = vadd.f32 %v350, %v381
    %383 = vmatmul.f32.gmra.mxu0 %v321
    %v384 = vpop.f32.mrf.mxu0
    %v385 = vadd.f32 %v350, %v384
    %386 = vmatmul.f32.gmra.mxu0 %v322
    %v387 = vpop.f32.mrf.mxu0
    %v388 = vadd.f32 %v350, %v387
    %389 = vmatmul.f32.gmra.mxu0 %v323
    %v390 = vpop.f32.mrf.mxu0
    %v391 = vadd.f32 %v350, %v390
    %392 = vmatmul.f32.gmra.mxu0 %v324
    %v393 = vpop.f32.mrf.mxu0
    %v394 = vadd.f32 %v350, %v393
    %395 = vmatmul.f32.gmra.mxu0 %v325
    %v396 = vpop.f32.mrf.mxu0
    %v397 = vadd.f32 %v350, %v396
    %398 = vmatmul.f32.gmra.mxu0 %v326
    %v399 = vpop.f32.mrf.mxu0
    %v400 = vadd.f32 %v350, %v399
    %401 = vmatmul.f32.gmra.mxu0 %v327
    %v402 = vpop.f32.mrf.mxu0
    %v403 = vadd.f32 %v350, %v402
    %404 = vmatmul.f32.gmra.mxu0 %v328
    %v405 = vpop.f32.mrf.mxu0
    %v406 = vadd.f32 %v350, %v405
    %407 = vmatmul.f32.gmra.mxu0 %v329
    %v408 = vpop.f32.mrf.mxu0
    %v409 = vadd.f32 %v350, %v408
    %410 = vmatmul.f32.gmra.mxu0 %v330
    %v411 = vpop.f32.mrf.mxu0
    %v412 = vadd.f32 %v350, %v411
    %413 = vmatmul.f32.gmra.mxu0 %v331
    %v414 = vpop.f32.mrf.mxu0
    %v415 = vadd.f32 %v350, %v414
    %416 = vdwg.mxu0
    %417 = vmatpush.xpose.msra.mxu0 %v415
    %418 = vmatpush.xpose.msra.mxu0 %v412
    %419 = vmatpush.xpose.msra.mxu0 %v409
    %420 = vmatpush.xpose.msra.mxu0 %v406
    %421 = vmatpush.xpose.msra.mxu0 %v403
    %422 = vmatpush.xpose.msra.mxu0 %v400
    %423 = vmatpush.xpose.msra.mxu0 %v397
    %424 = vmatpush.xpose.msra.mxu0 %v394
    %425 = vmatpush.xpose.msra.mxu0 %v391
    %426 = vmatpush.xpose.msra.mxu0 %v388
    %427 = vmatpush.xpose.msra.mxu0 %v385
    %428 = vmatpush.xpose.msra.mxu0 %v382
    %429 = vmatpush.xpose.msra.mxu0 %v379
    %430 = vmatpush.xpose.msra.mxu0 %v376
    %431 = vmatpush.xpose.msra.mxu0 %v373
    %432 = vmatpush.xpose.msra.mxu0 %v370
    %433 = vmatmul.f32.gmra.mxu0 1.0
    %v434 = vpop.f32.mrf.mxu0
    %v435 = vadd.f32 0.0, %v434
    %436 = vdwg.mxu0
    %v437 = vsub.f32 0.0, %v435
    %438 = vst [vmem:[#allocation12] sm:$0xff] %v437
    %v439 = vsub.f32 0.0, %v370
    %v440 = vsub.f32 0.0, %v373
    %v441 = vsub.f32 0.0, %v376
    %v442 = vsub.f32 0.0, %v379
    %v443 = vsub.f32 0.0, %v382
    %v444 = vsub.f32 0.0, %v385
    %v445 = vsub.f32 0.0, %v388
    %v446 = vsub.f32 0.0, %v391
    %v447 = vsub.f32 0.0, %v394
    %v448 = vsub.f32 0.0, %v397
    %v449 = vsub.f32 0.0, %v400
    %v450 = vsub.f32 0.0, %v403
    %v451 = vsub.f32 0.0, %v406
    %v452 = vsub.f32 0.0, %v409
    %v453 = vsub.f32 0.0, %v412
    %v454 = vsub.f32 0.0, %v415
    %v455 = vmul.f32 %v439, 1.442695
    %v456 = vpow.pop %v455
    %v457 = vmul.f32 %v440, 1.442695
    %v458 = vpow.pop %v457
    %v459 = vmul.f32 %v441, 1.442695
    %v460 = vpow.pop %v459
    %v461 = vmul.f32 %v442, 1.442695
    %v462 = vpow.pop %v461
    %v463 = vmul.f32 %v443, 1.442695
    %v464 = vpow.pop %v463
    %v465 = vmul.f32 %v444, 1.442695
    %v466 = vpow.pop %v465
    %v467 = vmul.f32 %v445, 1.442695
    %v468 = vpow.pop %v467
    %v469 = vmul.f32 %v446, 1.442695
    %v470 = vpow.pop %v469
    %v471 = vmul.f32 %v447, 1.442695
    %v472 = vpow.pop %v471
    %v473 = vmul.f32 %v448, 1.442695
    %v474 = vpow.pop %v473
    %v475 = vmul.f32 %v449, 1.442695
    %v476 = vpow.pop %v475
    %v477 = vmul.f32 %v450, 1.442695
    %v478 = vpow.pop %v477
    %v479 = vmul.f32 %v451, 1.442695
    %v480 = vpow.pop %v479
    %v481 = vmul.f32 %v452, 1.442695
    %v482 = vpow.pop %v481
    %v483 = vmul.f32 %v453, 1.442695
    %v484 = vpow.pop %v483
    %v485 = vmul.f32 %v454, 1.442695
    %v486 = vpow.pop %v485
    %v487 = vld [vmem:[#allocation8] sm:$0xff]
    %v488 = vld [vmem:[#allocation8 + $0x8] sm:$0xff]
    %v489 = vld [vmem:[#allocation8 + $0x10] sm:$0xff]
    %v490 = vld [vmem:[#allocation8 + $0x18] sm:$0xff]
    %v491 = vld [vmem:[#allocation8 + $0x20] sm:$0xff]
    %v492 = vld [vmem:[#allocation8 + $0x28] sm:$0xff]
    %v493 = vld [vmem:[#allocation8 + $0x30] sm:$0xff]
    %v494 = vld [vmem:[#allocation8 + $0x38] sm:$0xff]
    %v495 = vld [vmem:[#allocation8 + $0x40] sm:$0xff]
    %v496 = vld [vmem:[#allocation8 + $0x48] sm:$0xff]
    %v497 = vld [vmem:[#allocation8 + $0x50] sm:$0xff]
    %v498 = vld [vmem:[#allocation8 + $0x58] sm:$0xff]
    %v499 = vld [vmem:[#allocation8 + $0x60] sm:$0xff]
    %v500 = vld [vmem:[#allocation8 + $0x68] sm:$0xff]
    %v501 = vld [vmem:[#allocation8 + $0x70] sm:$0xff]
    %v502 = vld [vmem:[#allocation8 + $0x78] sm:$0xff]
    %v503 = vld [vmem:[%s6] sm:$0x1]
    %v505 = vperm.slane %v503, 0
    %507 = vmatpush.msra.mxu0 %v502
    %508 = vmatpush.msra.mxu0 %v501
    %509 = vmatpush.msra.mxu0 %v500
    %510 = vmatpush.msra.mxu0 %v499
    %511 = vmatpush.msra.mxu0 %v498
    %512 = vmatpush.msra.mxu0 %v497
    %513 = vmatpush.msra.mxu0 %v496
    %514 = vmatpush.msra.mxu0 %v495
    %515 = vmatpush.msra.mxu0 %v494
    %516 = vmatpush.msra.mxu0 %v493
    %517 = vmatpush.msra.mxu0 %v492
    %518 = vmatpush.msra.mxu0 %v491
    %519 = vmatpush.msra.mxu0 %v490
    %520 = vmatpush.msra.mxu0 %v489
    %521 = vmatpush.msra.mxu0 %v488
    %522 = vmatpush.msra.mxu0 %v487
    %523 = vmatmul.f32.gmra.mxu0 %v316
    %v524 = vpop.f32.mrf.mxu0
    %v525 = vadd.f32 %v505, %v524
    %526 = vmatmul.f32.gmra.mxu0 %v317
    %v527 = vpop.f32.mrf.mxu0
    %v528 = vadd.f32 %v505, %v527
    %529 = vmatmul.f32.gmra.mxu0 %v318
    %v530 = vpop.f32.mrf.mxu0
    %v531 = vadd.f32 %v505, %v530
    %532 = vmatmul.f32.gmra.mxu0 %v319
    %v533 = vpop.f32.mrf.mxu0
    %v534 = vadd.f32 %v505, %v533
    %535 = vmatmul.f32.gmra.mxu0 %v320
    %v536 = vpop.f32.mrf.mxu0
    %v537 = vadd.f32 %v505, %v536
    %538 = vmatmul.f32.gmra.mxu0 %v321
    %v539 = vpop.f32.mrf.mxu0
    %v540 = vadd.f32 %v505, %v539
    %541 = vmatmul.f32.gmra.mxu0 %v322
    %v542 = vpop.f32.mrf.mxu0
    %v543 = vadd.f32 %v505, %v542
    %544 = vmatmul.f32.gmra.mxu0 %v323
    %v545 = vpop.f32.mrf.mxu0
    %v546 = vadd.f32 %v505, %v545
    %547 = vmatmul.f32.gmra.mxu0 %v324
    %v548 = vpop.f32.mrf.mxu0
    %v549 = vadd.f32 %v505, %v548
    %550 = vmatmul.f32.gmra.mxu0 %v325
    %v551 = vpop.f32.mrf.mxu0
    %v552 = vadd.f32 %v505, %v551
    %553 = vmatmul.f32.gmra.mxu0 %v326
    %v554 = vpop.f32.mrf.mxu0
    %v555 = vadd.f32 %v505, %v554
    %556 = vmatmul.f32.gmra.mxu0 %v327
    %v557 = vpop.f32.mrf.mxu0
    %v558 = vadd.f32 %v505, %v557
    %559 = vmatmul.f32.gmra.mxu0 %v328
    %v560 = vpop.f32.mrf.mxu0
    %v561 = vadd.f32 %v505, %v560
    %562 = vmatmul.f32.gmra.mxu0 %v329
    %v563 = vpop.f32.mrf.mxu0
    %v564 = vadd.f32 %v505, %v563
    %565 = vmatmul.f32.gmra.mxu0 %v330
    %v566 = vpop.f32.mrf.mxu0
    %v567 = vadd.f32 %v505, %v566
    %568 = vmatmul.f32.gmra.mxu0 %v331
    %v569 = vpop.f32.mrf.mxu0
    %v570 = vadd.f32 %v505, %v569
    %571 = vdwg.mxu0
    %v572 = vsub.f32 %v114, %v525
    %v573 = vsub.f32 %v115, %v528
    %v574 = vsub.f32 %v116, %v531
    %v575 = vsub.f32 %v117, %v534
    %v576 = vsub.f32 %v118, %v537
    %v577 = vsub.f32 %v119, %v540
    %v578 = vsub.f32 %v120, %v543
    %v579 = vsub.f32 %v121, %v546
    %v580 = vsub.f32 %v122, %v549
    %v581 = vsub.f32 %v123, %v552
    %v582 = vsub.f32 %v124, %v555
    %v583 = vsub.f32 %v125, %v558
    %v584 = vsub.f32 %v126, %v561
    %v585 = vsub.f32 %v127, %v564
    %v586 = vsub.f32 %v128, %v567
    %v587 = vsub.f32 %v129, %v570
    %v588 = vmul.f32 %v572, %v456
    %v589 = vmul.f32 %v573, %v458
    %v590 = vmul.f32 %v574, %v460
    %v591 = vmul.f32 %v575, %v462
    %v592 = vmul.f32 %v576, %v464
    %v593 = vmul.f32 %v577, %v466
    %v594 = vmul.f32 %v578, %v468
    %v595 = vmul.f32 %v579, %v470
    %v596 = vmul.f32 %v580, %v472
    %v597 = vmul.f32 %v581, %v474
    %v598 = vmul.f32 %v582, %v476
    %v599 = vmul.f32 %v583, %v478
    %v600 = vmul.f32 %v584, %v480
    %v601 = vmul.f32 %v585, %v482
    %v602 = vmul.f32 %v586, %v484
    %v603 = vmul.f32 %v587, %v486
    %604 = vst [vmem:[#allocation11] sm:$0xff] %v588
    %605 = vst [vmem:[#allocation11 + $0x8] sm:$0xff] %v589
    %606 = vst [vmem:[#allocation11 + $0x10] sm:$0xff] %v590
    %607 = vst [vmem:[#allocation11 + $0x18] sm:$0xff] %v591
    %608 = vst [vmem:[#allocation11 + $0x20] sm:$0xff] %v592
    %609 = vst [vmem:[#allocation11 + $0x28] sm:$0xff] %v593
    %610 = vst [vmem:[#allocation11 + $0x30] sm:$0xff] %v594
    %611 = vst [vmem:[#allocation11 + $0x38] sm:$0xff] %v595
    %612 = vst [vmem:[#allocation11 + $0x40] sm:$0xff] %v596
    %613 = vst [vmem:[#allocation11 + $0x48] sm:$0xff] %v597
    %614 = vst [vmem:[#allocation11 + $0x50] sm:$0xff] %v598
    %615 = vst [vmem:[#allocation11 + $0x58] sm:$0xff] %v599
    %616 = vst [vmem:[#allocation11 + $0x60] sm:$0xff] %v600
    %617 = vst [vmem:[#allocation11 + $0x68] sm:$0xff] %v601
    %618 = vst [vmem:[#allocation11 + $0x70] sm:$0xff] %v602
    %619 = vst [vmem:[#allocation11 + $0x78] sm:$0xff] %v603
    // Predicated region
    $region58: #{tpu_custom_call.1} parent=1 // pred_check
      _
    $region59: #{tpu_custom_call.1} parent=1 // pred_check_branch
      %621 = sbr.rel (0) target = $region61
    $region60: #{tpu_custom_call.1} parent=1 // pred_region
      %623 = vsyncadd [#allocation4], 0
      %s624 = sshll.u32 [#allocation11], 4
      %s625 = int_to_ptr.vmem [resolvable:$true] %s624
      %s626 = sshll.u32 %s9, 4
      %s627 = int_to_ptr.hbm [resolvable:$true] %s626
      %632 = dma.vmem_to_hbm [thread:$0]  %s625, 2048, %s627, [#allocation4], 128, 128, 8
    $region61: #{tpu_custom_call.1} parent=1 // pred_fallthru
      _
    // Predicated region
    $region62: #{tpu_custom_call.1} parent=1 // pred_check
      _
    $region63: #{tpu_custom_call.1} parent=1 // pred_check_branch
      %634 = sbr.rel (0) target = $region65
    $region64: #{tpu_custom_call.1} parent=1 // pred_region
      %636 = vsyncadd [#allocation13], 0
      %s638 = sshll.u32 [#allocation12], 4
      %s639 = int_to_ptr.vmem [resolvable:$true] %s638
      %s640 = sshll.u32 %s10, 4
      %s641 = int_to_ptr.hbm [resolvable:$true] %s640
      %643 = dma.vmem_to_hbm [thread:$0]  %s639, 128, %s641, [#allocation13]
    $region65: #{tpu_custom_call.1} parent=1 // pred_fallthru
      _
    // Predicated region
    $region66: #{tpu_custom_call.1} parent=1 // pred_check
      _
    $region67: #{tpu_custom_call.1} parent=1 // pred_check_branch
      %645 = sbr.rel (0) target = $region69
    $region68: #{tpu_custom_call.1} parent=1 // pred_region
      %647 = dma.done [#allocation4], 2048
    $region69: #{tpu_custom_call.1} parent=1 // pred_fallthru
      _
    // Predicated region
    $region70: #{tpu_custom_call.1} parent=1 // pred_check
      _
    $region71: #{tpu_custom_call.1} parent=1 // pred_check_branch
      %649 = sbr.rel (0) target = $region73
    $region72: #{tpu_custom_call.1} parent=1 // pred_region
      %651 = dma.done [#allocation13], 128
    $region73: #{tpu_custom_call.1} parent=1 // pred_fallthru
      _
    %652 = vsyncpa [#allocation3], 1
    %653 = vsyncpa [#allocation6], 1
    %654 = vsyncpa [#allocation9], 1
    %655 = vsyncpa [#allocation4], 1
    %656 = vsyncpa [#allocation13], 1

</llo_original>
